<compile_context>
chip_gen: v7x
topology: tpu7x:2x2x1
jax: 0.10.0
libtpu: 0.0.40
codegen_flags: <defaults>
</compile_context>

<pallas_src>
import math

import jax
import jax.numpy as jnp
from jax import lax
from jax.experimental import pallas as pl
from jax.experimental.pallas import tpu as pltpu

SELU_ALPHA = 1.6732632423543772
SELU_SCALE = 1.0507009873554805
_LANES = 128


def _stats_rows(n_clusters):
    raw = 2 * n_clusters + 2
    return ((raw + 7) // 8) * 8


def _graphs_per_step(batch, n_nodes):
    """Graphs per grid step: amortize ~0.35us/step overhead on small graphs."""
    if n_nodes > 256:
        return 1
    cap = max(1, min(8, 1024 // max(n_nodes, 1), batch))
    bt = 1
    for d in range(1, cap + 1):
        if batch % d == 0:
            bt = d
    return bt


def _vmem_capacity_bytes():
    """Per-generation VMEM capacity (v5e/v6e 128 MiB, v7x 64 MiB)."""
    try:
        cap = getattr(pltpu.get_tpu_info(), "vmem_capacity_bytes", None)
        if cap:
            return int(cap)
    except Exception:
        pass
    return 64 << 20          # conservative fallback (v7x per-TensorCore)


def _fuse_weights(w, ws):
    """Concatenate weight + skip_weight into one MXU operand."""
    din, dout = w.shape
    if dout <= din:
        return jnp.concatenate([w, ws], axis=1)    # (din, 2*dout):  h @ [w|ws]
    return jnp.concatenate([w, ws], axis=0)        # (2*din, dout): [Ah|h] @ [w;ws]


# ----------------------------------------------------------------------------
# Fused kernel: normalize + GCN(SELU) x2 + DMoN statistics, bt graphs / step.
# ----------------------------------------------------------------------------
def _make_fused_kernel(n_nodes, feat_dims, n_clusters, bt, compute_dtype):
    N = n_nodes
    Fin, Hid, Out = feat_dims
    C = n_clusters
    R = _stats_rows(C)
    f32 = jnp.float32
    cdt = jnp.dtype(compute_dtype)
    a_is_f32 = cdt == jnp.dtype(jnp.float32)

    def kernel(a_ref, x_ref, w1_ref, b1_ref, w2_ref, b2_ref, fcw_ref, fcb_ref,
               assign_ref, stats_ref):
        # Weights: loaded/cast once per grid step, shared by all bt graphs.
        w1 = w1_ref[...].astype(cdt)
        b1 = b1_ref[...]
        w2 = w2_ref[...].astype(cdt)
        b2 = b2_ref[...]
        fcw = fcw_ref[...].astype(cdt)
        fcb = fcb_ref[...]
        ones_col = None if a_is_f32 else jnp.ones((N, 1), cdt)   # hoisted

        # bt <= 8: static unroll keeps all indexing static and tiny.
        for g in range(bt):
            a = a_ref[g]                         # (N, N) in compute dtype
            x = x_ref[g].astype(f32)             # (N, Fin)

            # --- degrees in full f32 precision --------------------------------
            # TODO(synk): normalize_graph() is undefined in the source file; we
            # use the standard DMoN normalization D^-1/2 A D^-1/2 WITHOUT
            # self-loops (the GCNLayer_Dmon path of the reference model).
            if a_is_f32:
                deg = jnp.sum(a, axis=-1, keepdims=True)                 # (N, 1)
            else:
                # MXU dot with f32 accumulation: exact sum of the bf16 A values
                # without materializing an f32 copy of A in VMEM.
                deg = jnp.dot(a, ones_col, preferred_element_type=f32)   # (N, 1)
            d_is = jnp.where(deg > 0.0, lax.rsqrt(deg), 0.0)             # D^-1/2

            def gcn_selu(h, wcat, b, din, dout):
                # A_norm @ Y folded as d^-1/2 * (A @ (d^-1/2 * Y)); fused
                # weight halves the number of tiny MXU pushes per layer.
                if dout <= din:
                    # h @ [w | ws] -> split; aggregate on the (cheaper) dout side.
                    both = jnp.dot(h.astype(cdt), wcat,
                                   preferred_element_type=f32)           # (N, 2*dout)
                    agg = d_is * jnp.dot(
                        a, (d_is * both[:, :dout]).astype(cdt),
                        preferred_element_type=f32)
                    y = agg + both[:, dout:2 * dout] + b
                else:
                    # [A_norm@h | h] @ [w ; ws]: agg + skip in one dot.
                    ah = d_is * jnp.dot(a, (d_is * h).astype(cdt),
                                        preferred_element_type=f32)      # (N, din)
                    cat = jnp.concatenate([ah, h], axis=-1)              # (N, 2*din)
                    y = jnp.dot(cat.astype(cdt), wcat,
                                preferred_element_type=f32) + b
                # SELU; exp only on the non-positive branch (EUP hygiene).
                return SELU_SCALE * jnp.where(
                    y > 0.0, y,
                    SELU_ALPHA * (jnp.exp(jnp.minimum(y, 0.0)) - 1.0))

            h1 = gcn_selu(x, w1, b1, Fin, Hid)
            h2 = gcn_selu(h1, w2, b2, Hid, Out)

            # --- DMoN head (dropout rate 0 -> identity) -----------------------
            logits = jnp.dot(h2.astype(cdt), fcw,
                             preferred_element_type=f32) + fcb
            m = jnp.max(logits, axis=-1, keepdims=True)
            e = jnp.exp(logits - m)
            s = e / jnp.sum(e, axis=-1, keepdims=True)                   # (N, C)
            assign_ref[g] = s

            csize = jnp.sum(s, axis=0, keepdims=True)                    # (1, C)
            ew = jnp.sum(deg, keepdims=True)                             # (1, 1)

            contract0 = (((0,), (0,)), ((), ()))                         # over nodes
            a_s = jnp.dot(a, s.astype(cdt), preferred_element_type=f32)  # (N, C)
            gp = lax.dot_general(s, a_s, contract0,
                                 preferred_element_type=f32)             # S^T A S
            nl = lax.dot_general(s, deg, contract0,
                                 preferred_element_type=f32)             # (C, 1)
            nr = lax.dot_general(deg, s, contract0,
                                 preferred_element_type=f32)             # (1, C)
            nlr = nl * nr                                                # (C, C)

            # --- pack tiny statistics into one lane-dense (R, 128) slab -------
            # rows [0, C): graph_pooled | rows [C, 2C): normalizer_l @ r
            # row 2C: cluster sizes     | row 2C+1 lane 0: edge weight
            # Direct sub-slice stores (zero + masked stores); one HBM DMA/graph.
            stats_ref[g] = jnp.zeros((R, _LANES), f32)
            stats_ref[g, 0:C, 0:C] = gp
            stats_ref[g, C:2 * C, 0:C] = nlr
            stats_ref[g, 2 * C:2 * C + 1, 0:C] = csize
            stats_ref[g, 2 * C + 1:2 * C + 2, 0:C] = ew * jnp.ones((1, C), f32)

    return kernel


# ----------------------------------------------------------------------------
# Full GCN_DMoN forward (kernel + loss epilogue).
# ----------------------------------------------------------------------------
def gcn_dmon_forward(A, X, params, n_clusters, *, compute_dtype=jnp.bfloat16):
    B, N, _ = A.shape
    Fin = X.shape[-1]
    Hid = params["w_h"].shape[1]
    Out = params["w_o"].shape[1]
    C = n_clusters
    assert params["fc_w"].shape == (Out, C)
    assert C <= _LANES, "stats packing assumes n_clusters <= 128"
    R = _stats_rows(C)
    bt = _graphs_per_step(B, N)
    cdt = jnp.dtype(compute_dtype)
    itemsize_a = cdt.itemsize

    # A is the only O(N^2) operand: feed it in the compute dtype (bf16 by
    # default) to halve the dominant HBM read and the double-buffered VMEM
    # footprint.  (Keep A stored in bf16 upstream to make this cast a no-op.)
    a_in = A if A.dtype == cdt else A.astype(cdt)
    x_in = X.astype(jnp.float32)

    # Fused weight operands, built once outside the kernel.
    w1 = _fuse_weights(params["w_h"], params["ws_h"])
    w2 = _fuse_weights(params["w_o"], params["ws_o"])
    b1, b2 = params["b_h"], params["b_o"]
    fcw, fcb = params["fc_w"], params["fc_b"]

    # --- cost estimate (lets XLA schedule the loss epilogue around the call) -
    def layer_flops(din, dout):
        return 2 * N * N * min(din, dout) + 4 * N * din * dout
    flops = B * (layer_flops(Fin, Hid) + layer_flops(Hid, Out)
                 + 2 * N * Out * C + 2 * N * N * (C + 1)
                 + 2 * N * C * C + 4 * N * C)
    transcendentals = B * N * (Hid + Out + C + 1)      # SELU + softmax + rsqrt
    weights_bytes = 4 * int(w1.size + w2.size + b1.size + b2.size
                            + fcw.size + fcb.size)
    bytes_accessed = (itemsize_a * B * N * N
                      + 4 * B * (N * Fin + N * C + R * _LANES)
                      + weights_bytes)

    # --- per-generation VMEM budget ------------------------------------------
    per_step = bt * (itemsize_a * N * N + 4 * (N * Fin + N * C + R * _LANES))
    live = 4 * bt * N * (Fin + 2 * Hid + 2 * Out + 3 * C + 4)
    need = 2 * per_step + weights_bytes + live + (4 << 20)
    vmem_limit = int(min(max(need, 16 << 20), _vmem_capacity_bytes() * 3 // 4))
    # TODO(synk): if `need` exceeds the clamp (very large N), switch to
    # node-row tiling of A (grid over row blocks) instead of whole-graph blocks.

    kernel = _make_fused_kernel(N, (Fin, Hid, Out), C, bt, compute_dtype)
    assignments, stats = pl.pallas_call(
        kernel,
        out_shape=(
            jax.ShapeDtypeStruct((B, N, C), jnp.float32),       # soft assignments
            jax.ShapeDtypeStruct((B, R, _LANES), jnp.float32),  # packed statistics
        ),
        grid=(B // bt,),
        in_specs=[
            pl.BlockSpec((bt, N, N), lambda b: (b, 0, 0)),      # A (compute dtype)
            pl.BlockSpec((bt, N, Fin), lambda b: (b, 0, 0)),    # X
            pl.BlockSpec(w1.shape, lambda b: (0, 0)),           # fused layer-1 weight
            pl.BlockSpec(b1.shape, lambda b: (0, 0)),           # b_h
            pl.BlockSpec(w2.shape, lambda b: (0, 0)),           # fused layer-2 weight
            pl.BlockSpec(b2.shape, lambda b: (0, 0)),           # b_o
            pl.BlockSpec(fcw.shape, lambda b: (0, 0)),          # fc_w
            pl.BlockSpec(fcb.shape, lambda b: (0, 0)),          # fc_b
        ],
        out_specs=(
            pl.BlockSpec((bt, N, C), lambda b: (b, 0, 0)),
            pl.BlockSpec((bt, R, _LANES), lambda b: (b, 0, 0)),
        ),
        compiler_params=pltpu.CompilerParams(
            dimension_semantics=("parallel",),
            vmem_limit_bytes=vmem_limit,
        ),
        cost_estimate=pl.CostEstimate(
            flops=int(flops),
            transcendentals=int(transcendentals),
            bytes_accessed=int(bytes_accessed),
        ),
    )(a_in, x_in, w1, b1, w2, b2, fcw, fcb)

    # --- unpack the lane-dense stats slab ------------------------------------
    graph_pooled = stats[:, 0:C, 0:C]          # (B, C, C)  S^T A S
    nlr = stats[:, C:2 * C, 0:C]               # (B, C, C)  (S^T deg)(deg^T S)
    cluster_sizes = stats[:, 2 * C, 0:C]       # (B, C)
    edge_weights = stats[:, 2 * C + 1, 0]      # (B,)

    # NOTE: the reference divides a (B, C, C) tensor by edge_weights of shape
    # (B,), which broadcasts along the *last* (cluster) axis; this is only
    # legal when C == B or B == 1.  We reproduce that exact broadcasting.
    normalizer = nlr / 2.0 / edge_weights
    spectral_loss = (
        -jnp.trace(graph_pooled - normalizer, axis1=-2, axis2=-1).sum()
        / 2.0 / edge_weights / B
    )
    collapse_loss = (
        jnp.linalg.norm(cluster_sizes) / N
        * jnp.sqrt(jnp.array([n_clusters], dtype=jnp.float32)) - 1.0
    ) / B
    return assignments, spectral_loss, collapse_loss


# ----------------------------------------------------------------------------
# Parameter init (mirrors the PyTorch reset_parameters / nn.Linear bounds).
# ----------------------------------------------------------------------------
def init_params(key, n_in, n_hid, n_out, n_clusters):
    keys = jax.random.split(key, 8)

    def unif(k, shape, bound):
        return jax.random.uniform(k, shape, jnp.float32, -bound, bound)

    stdv_h = 1.0 / math.sqrt(n_hid)
    stdv_o = 1.0 / math.sqrt(n_out)
    stdv_fc = 1.0 / math.sqrt(n_out)
    return dict(
        w_h=unif(keys[0], (n_in, n_hid), stdv_h),
        ws_h=unif(keys[1], (n_in, n_hid), stdv_h),
        b_h=unif(keys[2], (1, n_hid), stdv_h),
        w_o=unif(keys[3], (n_hid, n_out), stdv_o),
        ws_o=unif(keys[4], (n_hid, n_out), stdv_o),
        b_o=unif(keys[5], (1, n_out), stdv_o),
        fc_w=unif(keys[6], (n_out, n_clusters), stdv_fc),
        fc_b=unif(keys[7], (1, n_clusters), stdv_fc),
    )


# ----------------------------------------------------------------------------
# Pure-JAX reference (high-precision einsums) for correctness checking.
# ----------------------------------------------------------------------------
def _reference_forward(A, X, params, n_clusters):
    hp = jax.lax.Precision.HIGHEST
    B, N, _ = A.shape
    deg = A.sum(-1, keepdims=True)                        # (B, N, 1)
    dis = jnp.where(deg > 0.0, 1.0 / jnp.sqrt(deg), 0.0)
    A_norm = dis * A * jnp.swapaxes(dis, -1, -2)

    def layer(h, w, ws, b):
        y = (jnp.einsum("bnm,bmf,fo->bno", A_norm, h, w, precision=hp)
             + jnp.einsum("bnf,fo->bno", h, ws, precision=hp) + b)
        return SELU_SCALE * jnp.where(
            y > 0.0, y, SELU_ALPHA * (jnp.exp(jnp.minimum(y, 0.0)) - 1.0))

    h = layer(X, params["w_h"], params["ws_h"], params["b_h"])
    h = layer(h, params["w_o"], params["ws_o"], params["b_o"])
    logits = jnp.einsum("bnf,fc->bnc", h, params["fc_w"], precision=hp) + params["fc_b"]
    s = jax.nn.softmax(logits, axis=-1)

    csize = s.sum(1)                                      # (B, C)
    ew = deg[..., 0].sum(-1)                              # (B,)
    gp = jnp.einsum("bnc,bnm,bmk->bck", s, A, s, precision=hp)
    nl = jnp.einsum("bnc,bn->bc", s, deg[..., 0], precision=hp)
    nlr = nl[:, :, None] * nl[:, None, :]
    normalizer = nlr / 2.0 / ew
    spectral = (-jnp.trace(gp - normalizer, axis1=-2, axis2=-1).sum()
                / 2.0 / ew / B)
    collapse = (jnp.linalg.norm(csize) / N
                * jnp.sqrt(jnp.array([n_clusters], jnp.float32)) - 1.0) / B
    return s, spectral, collapse


if __name__ == "__main__":
    # n_clusters == batch so the reference's (B,C,C)/(B,) broadcast is legal,
    # exactly as it would be required in the original PyTorch code.
    B, N = 2, 16
    n_in, n_hid, n_out, n_clusters = 8, 32, 16, 2

    key = jax.random.PRNGKey(0)
    k_a, k_x, k_p = jax.random.split(key, 3)

    A = jax.random.uniform(k_a, (B, N, N), jnp.float32)
    A = (A + jnp.swapaxes(A, -1, -2)) / 2.0                   # symmetric weighted graph
    A = A * (1.0 - jnp.eye(N, dtype=jnp.float32)[None])       # zero diagonal
    X = jax.random.normal(k_x, (B, N, n_in), jnp.float32)

    params = init_params(k_p, n_in, n_hid, n_out, n_clusters)
    ref_s, ref_spec, ref_col = _reference_forward(A, X, params, n_clusters)

    # --- f32 compute path: strict check against the f32 reference ------------
    fwd_f32 = jax.jit(lambda a, x: gcn_dmon_forward(
        a, x, params, n_clusters, compute_dtype=jnp.float32))
    s32, sp32, cl32 = fwd_f32(A, X)
    jax.block_until_ready((s32, sp32, cl32))
    assert s32.shape == (B, N, n_clusters)
    assert sp32.shape == (B,)       # same (odd) shape as the PyTorch code
    assert cl32.shape == (1,)
    assert bool(jnp.allclose(s32, ref_s, rtol=5e-3, atol=5e-3))
    assert bool(jnp.allclose(sp32, ref_spec, rtol=5e-3, atol=5e-3))
    assert bool(jnp.allclose(cl32, ref_col, rtol=5e-3, atol=5e-3))

    # --- default bf16-A fast path: looser tolerance (bf16 MXU operands with
    # --- f32 accumulation quantize A / activations at ~0.4% relative) --------
    fwd_bf16 = jax.jit(lambda a, x: gcn_dmon_forward(a, x, params, n_clusters))
    sb, spb, clb = fwd_bf16(A, X)
    jax.block_until_ready((sb, spb, clb))
    assert sb.shape == (B, N, n_clusters)
    assert bool(jnp.allclose(sb, ref_s, rtol=5e-2, atol=5e-2))
    assert bool(jnp.allclose(spb, ref_spec, rtol=5e-2, atol=5e-2))
    assert bool(jnp.allclose(clb, ref_col, rtol=5e-2, atol=5e-2))

    print("KERNEL_OK")
</pallas_src>

<mosaic_0001>
module attributes {stable_mosaic.version = 11 : i64} {
  func.func @kernel(%arg0: i32, %arg1: memref<2x16x16xf32, #tpu.memory_space<vmem>>, %arg2: memref<2x16x8xf32, #tpu.memory_space<vmem>>, %arg3: memref<16x32xf32, #tpu.memory_space<vmem>>, %arg4: memref<1x32xf32, #tpu.memory_space<vmem>>, %arg5: memref<32x32xf32, #tpu.memory_space<vmem>>, %arg6: memref<1x16xf32, #tpu.memory_space<vmem>>, %arg7: memref<16x2xf32, #tpu.memory_space<vmem>>, %arg8: memref<1x2xf32, #tpu.memory_space<vmem>>, %arg9: memref<2x16x2xf32, #tpu.memory_space<vmem>>, %arg10: memref<2x8x128xf32, #tpu.memory_space<vmem>>) attributes {dimension_semantics = [#tpu.dimension_semantics<parallel>], iteration_bounds = array<i64: 1>, scalar_prefetch = 0 : i64, scratch_operands = 0 : i64, tpu.core_type = #tpu.core_type<tc>, window_params = [{transform_indices = @transform_0, window_bounds = array<i64: 2, 16, 16>}, {transform_indices = @transform_1, window_bounds = array<i64: 2, 16, 8>}, {pipeline_mode = #tpu.pipeline_mode<synchronous>, transform_indices = @transform_2, window_bounds = array<i64: 16, 32>}, {pipeline_mode = #tpu.pipeline_mode<synchronous>, transform_indices = @transform_3, window_bounds = array<i64: 1, 32>}, {pipeline_mode = #tpu.pipeline_mode<synchronous>, transform_indices = @transform_4, window_bounds = array<i64: 32, 32>}, {pipeline_mode = #tpu.pipeline_mode<synchronous>, transform_indices = @transform_5, window_bounds = array<i64: 1, 16>}, {pipeline_mode = #tpu.pipeline_mode<synchronous>, transform_indices = @transform_6, window_bounds = array<i64: 16, 2>}, {pipeline_mode = #tpu.pipeline_mode<synchronous>, transform_indices = @transform_7, window_bounds = array<i64: 1, 2>}, {transform_indices = @transform_8, window_bounds = array<i64: 2, 16, 2>}, {transform_indices = @transform_9, window_bounds = array<i64: 2, 8, 128>}]} {
    %c0 = arith.constant 0 : index
    %c0_0 = arith.constant 0 : index
    %0 = vector.load %arg3[%c0, %c0_0] : memref<16x32xf32, #tpu.memory_space<vmem>>, vector<16x32xf32>
    %c0_1 = arith.constant 0 : index
    %c0_2 = arith.constant 0 : index
    %1 = vector.load %arg4[%c0_1, %c0_2] : memref<1x32xf32, #tpu.memory_space<vmem>>, vector<1x32xf32>
    %c0_3 = arith.constant 0 : index
    %c0_4 = arith.constant 0 : index
    %2 = vector.load %arg5[%c0_3, %c0_4] : memref<32x32xf32, #tpu.memory_space<vmem>>, vector<32x32xf32>
    %c0_5 = arith.constant 0 : index
    %c0_6 = arith.constant 0 : index
    %3 = vector.load %arg6[%c0_5, %c0_6] : memref<1x16xf32, #tpu.memory_space<vmem>>, vector<1x16xf32>
    %c0_7 = arith.constant 0 : index
    %c0_8 = arith.constant 0 : index
    %4 = vector.load %arg7[%c0_7, %c0_8] : memref<16x2xf32, #tpu.memory_space<vmem>>, vector<16x2xf32>
    %c0_9 = arith.constant 0 : index
    %c0_10 = arith.constant 0 : index
    %5 = vector.load %arg8[%c0_9, %c0_10] : memref<1x2xf32, #tpu.memory_space<vmem>>, vector<1x2xf32>
    %c0_11 = arith.constant 0 : index
    %c0_12 = arith.constant 0 : index
    %c0_13 = arith.constant 0 : index
    %6 = vector.load %arg1[%c0_11, %c0_12, %c0_13] : memref<2x16x16xf32, #tpu.memory_space<vmem>>, vector<1x16x16xf32>
    %7 = vector.shape_cast %6 : vector<1x16x16xf32> to vector<16x16xf32>
    %c0_14 = arith.constant 0 : index
    %c0_15 = arith.constant 0 : index
    %c0_16 = arith.constant 0 : index
    %8 = vector.load %arg2[%c0_14, %c0_15, %c0_16] : memref<2x16x8xf32, #tpu.memory_space<vmem>>, vector<1x16x8xf32>
    %9 = vector.shape_cast %8 : vector<1x16x8xf32> to vector<16x8xf32>
    %cst = arith.constant dense<0.000000e+00> : vector<16xf32>
    %10 = vector.multi_reduction <add>, %7, %cst [1] : vector<16x16xf32> to vector<16xf32>
    %11 = vector.shape_cast %10 : vector<16xf32> to vector<16x1xf32>
    %cst_17 = arith.constant 0.000000e+00 : f32
    %12 = vector.broadcast %cst_17 : f32 to vector<16x1xf32>
    %13 = arith.cmpf ogt, %11, %12 : vector<16x1xf32>
    %14 = math.rsqrt %11 : vector<16x1xf32>
    %cst_18 = arith.constant 0.000000e+00 : f32
    %15 = vector.broadcast %cst_18 : f32 to vector<16x1xf32>
    %16 = arith.select %13, %14, %15 : vector<16x1xi1>, vector<16x1xf32>
    %17 = vector.broadcast %16 : vector<16x1xf32> to vector<16x8xf32>
    %18 = arith.mulf %17, %9 : vector<16x8xf32>
    %cst_19 = arith.constant dense<0.000000e+00> : vector<16x8xf32>
    %19 = tpu.matmul %7, %18, %cst_19 {dimension_numbers = #tpu.dot_dimension_numbers<[1], [0], [0], [1], [0, 0, 1, 1], [], []>} : vector<16x16xf32>, vector<16x8xf32>, vector<16x8xf32> -> vector<16x8xf32>
    %20 = vector.broadcast %16 : vector<16x1xf32> to vector<16x8xf32>
    %21 = arith.mulf %20, %19 : vector<16x8xf32>
    %22 = tpu.concatenate %21, %9 in 1 : vector<16x8xf32>, vector<16x8xf32> -> vector<16x16xf32>
    %cst_20 = arith.constant dense<0.000000e+00> : vector<16x32xf32>
    %23 = tpu.matmul %22, %0, %cst_20 {dimension_numbers = #tpu.dot_dimension_numbers<[1], [0], [0], [1], [0, 0, 1, 1], [], []>} : vector<16x16xf32>, vector<16x32xf32>, vector<16x32xf32> -> vector<16x32xf32>
    %24 = vector.broadcast %1 : vector<1x32xf32> to vector<16x32xf32>
    %25 = arith.addf %23, %24 : vector<16x32xf32>
    %cst_21 = arith.constant 0.000000e+00 : f32
    %26 = vector.broadcast %cst_21 : f32 to vector<16x32xf32>
    %27 = arith.cmpf ogt, %25, %26 : vector<16x32xf32>
    %cst_22 = arith.constant 0.000000e+00 : f32
    %28 = vector.broadcast %cst_22 : f32 to vector<16x32xf32>
    %29 = arith.minimumf %25, %28 : vector<16x32xf32>
    %30 = math.exp %29 : vector<16x32xf32>
    %cst_23 = arith.constant 1.000000e+00 : f32
    %31 = vector.broadcast %cst_23 : f32 to vector<16x32xf32>
    %32 = arith.subf %30, %31 : vector<16x32xf32>
    %cst_24 = arith.constant 1.67326319 : f32
    %33 = vector.broadcast %cst_24 : f32 to vector<16x32xf32>
    %34 = arith.mulf %33, %32 : vector<16x32xf32>
    %35 = arith.select %27, %25, %34 : vector<16x32xi1>, vector<16x32xf32>
    %cst_25 = arith.constant 1.05070102 : f32
    %36 = vector.broadcast %cst_25 : f32 to vector<16x32xf32>
    %37 = arith.mulf %36, %35 : vector<16x32xf32>
    %cst_26 = arith.constant dense<0.000000e+00> : vector<16x32xf32>
    %38 = tpu.matmul %37, %2, %cst_26 {dimension_numbers = #tpu.dot_dimension_numbers<[1], [0], [0], [1], [0, 0, 1, 1], [], []>} : vector<16x32xf32>, vector<32x32xf32>, vector<16x32xf32> -> vector<16x32xf32>
    %39 = vector.extract_strided_slice %38 {offsets = [0, 0], sizes = [16, 16], strides = [1, 1]} : vector<16x32xf32> to vector<16x16xf32>
    %40 = vector.broadcast %16 : vector<16x1xf32> to vector<16x16xf32>
    %41 = arith.mulf %40, %39 : vector<16x16xf32>
    %cst_27 = arith.constant dense<0.000000e+00> : vector<16x16xf32>
    %42 = tpu.matmul %7, %41, %cst_27 {dimension_numbers = #tpu.dot_dimension_numbers<[1], [0], [0], [1], [0, 0, 1, 1], [], []>} : vector<16x16xf32>, vector<16x16xf32>, vector<16x16xf32> -> vector<16x16xf32>
    %43 = vector.broadcast %16 : vector<16x1xf32> to vector<16x16xf32>
    %44 = arith.mulf %43, %42 : vector<16x16xf32>
    %45 = vector.extract_strided_slice %38 {offsets = [0, 16], sizes = [16, 16], strides = [1, 1]} : vector<16x32xf32> to vector<16x16xf32>
    %46 = arith.addf %44, %45 : vector<16x16xf32>
    %47 = vector.broadcast %3 : vector<1x16xf32> to vector<16x16xf32>
    %48 = arith.addf %46, %47 : vector<16x16xf32>
    %cst_28 = arith.constant 0.000000e+00 : f32
    %49 = vector.broadcast %cst_28 : f32 to vector<16x16xf32>
    %50 = arith.cmpf ogt, %48, %49 : vector<16x16xf32>
    %cst_29 = arith.constant 0.000000e+00 : f32
    %51 = vector.broadcast %cst_29 : f32 to vector<16x16xf32>
    %52 = arith.minimumf %48, %51 : vector<16x16xf32>
    %53 = math.exp %52 : vector<16x16xf32>
    %cst_30 = arith.constant 1.000000e+00 : f32
    %54 = vector.broadcast %cst_30 : f32 to vector<16x16xf32>
    %55 = arith.subf %53, %54 : vector<16x16xf32>
    %cst_31 = arith.constant 1.67326319 : f32
    %56 = vector.broadcast %cst_31 : f32 to vector<16x16xf32>
    %57 = arith.mulf %56, %55 : vector<16x16xf32>
    %58 = arith.select %50, %48, %57 : vector<16x16xi1>, vector<16x16xf32>
    %cst_32 = arith.constant 1.05070102 : f32
    %59 = vector.broadcast %cst_32 : f32 to vector<16x16xf32>
    %60 = arith.mulf %59, %58 : vector<16x16xf32>
    %cst_33 = arith.constant dense<0.000000e+00> : vector<16x2xf32>
    %61 = tpu.matmul %60, %4, %cst_33 {dimension_numbers = #tpu.dot_dimension_numbers<[1], [0], [0], [1], [0, 0, 1, 1], [], []>} : vector<16x16xf32>, vector<16x2xf32>, vector<16x2xf32> -> vector<16x2xf32>
    %62 = vector.broadcast %5 : vector<1x2xf32> to vector<16x2xf32>
    %63 = arith.addf %61, %62 : vector<16x2xf32>
    %cst_34 = arith.constant dense<0xFF800000> : vector<16xf32>
    %64 = vector.multi_reduction <maximumf>, %63, %cst_34 [1] : vector<16x2xf32> to vector<16xf32>
    %65 = vector.shape_cast %64 : vector<16xf32> to vector<16x1xf32>
    %66 = vector.broadcast %65 : vector<16x1xf32> to vector<16x2xf32>
    %67 = arith.subf %63, %66 : vector<16x2xf32>
    %68 = math.exp %67 : vector<16x2xf32>
    %cst_35 = arith.constant dense<0.000000e+00> : vector<16xf32>
    %69 = vector.multi_reduction <add>, %68, %cst_35 [1] : vector<16x2xf32> to vector<16xf32>
    %70 = vector.shape_cast %69 : vector<16xf32> to vector<16x1xf32>
    %71 = vector.broadcast %70 : vector<16x1xf32> to vector<16x2xf32>
    %72 = arith.divf %68, %71 : vector<16x2xf32>
    %c0_36 = arith.constant 0 : index
    %c0_37 = arith.constant 0 : index
    %c0_38 = arith.constant 0 : index
    %73 = vector.load %arg9[%c0_36, %c0_37, %c0_38] : memref<2x16x2xf32, #tpu.memory_space<vmem>>, vector<1x16x2xf32>
    %74 = vector.shape_cast %73 : vector<1x16x2xf32> to vector<16x2xf32>
    %75 = vector.shape_cast %72 : vector<16x2xf32> to vector<1x16x2xf32>
    tpu.vector_store %arg9[%c0_36, %c0_37, %c0_38], %75 {strides = array<i32>} : memref<2x16x2xf32, #tpu.memory_space<vmem>>, vector<1x16x2xf32>,
    %cst_39 = arith.constant dense<0.000000e+00> : vector<2xf32>
    %76 = vector.multi_reduction <add>, %72, %cst_39 [0] : vector<16x2xf32> to vector<2xf32>
    %77 = vector.shape_cast %76 : vector<2xf32> to vector<1x2xf32>
    %78 = vector.shape_cast %11 : vector<16x1xf32> to vector<1x16x1xf32>
    %cst_40 = arith.constant dense<0.000000e+00> : vector<1xf32>
    %79 = vector.multi_reduction <add>, %78, %cst_40 [1, 2] : vector<1x16x1xf32> to vector<1xf32>
    %80 = vector.shape_cast %79 : vector<1xf32> to vector<1x1x1xf32>
    %81 = vector.extract %80[0, 0, 0] : f32 from vector<1x1x1xf32>
    %82 = vector.broadcast %81 : f32 to vector<1x1xf32>
    %cst_41 = arith.constant dense<0.000000e+00> : vector<16x2xf32>
    %83 = tpu.matmul %7, %72, %cst_41 {dimension_numbers = #tpu.dot_dimension_numbers<[1], [0], [0], [1], [0, 0, 1, 1], [], []>} : vector<16x16xf32>, vector<16x2xf32>, vector<16x2xf32> -> vector<16x2xf32>
    %cst_42 = arith.constant dense<0.000000e+00> : vector<2x2xf32>
    %84 = tpu.matmul %72, %83, %cst_42 {dimension_numbers = #tpu.dot_dimension_numbers<[0], [0], [1], [1], [0, 1, 1, 1], [], []>} : vector<16x2xf32>, vector<16x2xf32>, vector<2x2xf32> -> vector<2x2xf32>
    %cst_43 = arith.constant dense<0.000000e+00> : vector<2x1xf32>
    %85 = tpu.matmul %72, %11, %cst_43 {dimension_numbers = #tpu.dot_dimension_numbers<[0], [0], [1], [1], [0, 1, 1, 1], [], []>} : vector<16x2xf32>, vector<16x1xf32>, vector<2x1xf32> -> vector<2x1xf32>
    %cst_44 = arith.constant dense<0.000000e+00> : vector<1x2xf32>
    %86 = tpu.matmul %11, %72, %cst_44 {dimension_numbers = #tpu.dot_dimension_numbers<[0], [0], [1], [1], [0, 1, 1, 1], [], []>} : vector<16x1xf32>, vector<16x2xf32>, vector<1x2xf32> -> vector<1x2xf32>
    %87 = vector.broadcast %85 : vector<2x1xf32> to vector<2x2xf32>
    %88 = vector.broadcast %86 : vector<1x2xf32> to vector<2x2xf32>
    %89 = arith.mulf %87, %88 : vector<2x2xf32>
    %cst_45 = arith.constant 0.000000e+00 : f32
    %90 = vector.broadcast %cst_45 : f32 to vector<8x128xf32>
    %c0_46 = arith.constant 0 : index
    %c0_47 = arith.constant 0 : index
    %c0_48 = arith.constant 0 : index
    %91 = vector.load %arg10[%c0_46, %c0_47, %c0_48] : memref<2x8x128xf32, #tpu.memory_space<vmem>>, vector<1x8x128xf32>
    %92 = vector.shape_cast %91 : vector<1x8x128xf32> to vector<8x128xf32>
    %93 = vector.shape_cast %90 : vector<8x128xf32> to vector<1x8x128xf32>
    tpu.vector_store %arg10[%c0_46, %c0_47, %c0_48], %93 {strides = array<i32>} : memref<2x8x128xf32, #tpu.memory_space<vmem>>, vector<1x8x128xf32>,
    %c0_49 = arith.constant 0 : index
    %c0_50 = arith.constant 0 : index
    %c0_51 = arith.constant 0 : index
    %94 = vector.load %arg10[%c0_49, %c0_50, %c0_51] : memref<2x8x128xf32, #tpu.memory_space<vmem>>, vector<1x2x2xf32>
    %95 = vector.shape_cast %94 : vector<1x2x2xf32> to vector<2x2xf32>
    %96 = vector.shape_cast %84 : vector<2x2xf32> to vector<1x2x2xf32>
    tpu.vector_store %arg10[%c0_49, %c0_50, %c0_51], %96 {strides = array<i32>} : memref<2x8x128xf32, #tpu.memory_space<vmem>>, vector<1x2x2xf32>,
    %c0_52 = arith.constant 0 : index
    %c2 = arith.constant 2 : index
    %c0_53 = arith.constant 0 : index
    %97 = vector.load %arg10[%c0_52, %c2, %c0_53] : memref<2x8x128xf32, #tpu.memory_space<vmem>>, vector<1x2x2xf32>
    %98 = vector.shape_cast %97 : vector<1x2x2xf32> to vector<2x2xf32>
    %99 = vector.shape_cast %89 : vector<2x2xf32> to vector<1x2x2xf32>
    tpu.vector_store %arg10[%c0_52, %c2, %c0_53], %99 {strides = array<i32>} : memref<2x8x128xf32, #tpu.memory_space<vmem>>, vector<1x2x2xf32>,
    %c0_54 = arith.constant 0 : index
    %c4 = arith.constant 4 : index
    %c0_55 = arith.constant 0 : index
    %100 = vector.load %arg10[%c0_54, %c4, %c0_55] : memref<2x8x128xf32, #tpu.memory_space<vmem>>, vector<1x1x2xf32>
    %101 = vector.shape_cast %100 : vector<1x1x2xf32> to vector<1x2xf32>
    %102 = vector.shape_cast %77 : vector<1x2xf32> to vector<1x1x2xf32>
    tpu.vector_store %arg10[%c0_54, %c4, %c0_55], %102 {strides = array<i32>} : memref<2x8x128xf32, #tpu.memory_space<vmem>>, vector<1x1x2xf32>,
    %cst_56 = arith.constant 1.000000e+00 : f32
    %103 = vector.broadcast %cst_56 : f32 to vector<1x2xf32>
    %104 = vector.broadcast %82 : vector<1x1xf32> to vector<1x2xf32>
    %105 = arith.mulf %104, %103 : vector<1x2xf32>
    %c0_57 = arith.constant 0 : index
    %c5 = arith.constant 5 : index
    %c0_58 = arith.constant 0 : index
    %106 = vector.load %arg10[%c0_57, %c5, %c0_58] : memref<2x8x128xf32, #tpu.memory_space<vmem>>, vector<1x1x2xf32>
    %107 = vector.shape_cast %106 : vector<1x1x2xf32> to vector<1x2xf32>
    %108 = vector.shape_cast %105 : vector<1x2xf32> to vector<1x1x2xf32>
    tpu.vector_store %arg10[%c0_57, %c5, %c0_58], %108 {strides = array<i32>} : memref<2x8x128xf32, #tpu.memory_space<vmem>>, vector<1x1x2xf32>,
    %c1 = arith.constant 1 : index
    %c0_59 = arith.constant 0 : index
    %c0_60 = arith.constant 0 : index
    %109 = vector.load %arg1[%c1, %c0_59, %c0_60] : memref<2x16x16xf32, #tpu.memory_space<vmem>>, vector<1x16x16xf32>
    %110 = vector.shape_cast %109 : vector<1x16x16xf32> to vector<16x16xf32>
    %c1_61 = arith.constant 1 : index
    %c0_62 = arith.constant 0 : index
    %c0_63 = arith.constant 0 : index
    %111 = vector.load %arg2[%c1_61, %c0_62, %c0_63] : memref<2x16x8xf32, #tpu.memory_space<vmem>>, vector<1x16x8xf32>
    %112 = vector.shape_cast %111 : vector<1x16x8xf32> to vector<16x8xf32>
    %cst_64 = arith.constant dense<0.000000e+00> : vector<16xf32>
    %113 = vector.multi_reduction <add>, %110, %cst_64 [1] : vector<16x16xf32> to vector<16xf32>
    %114 = vector.shape_cast %113 : vector<16xf32> to vector<16x1xf32>
    %cst_65 = arith.constant 0.000000e+00 : f32
    %115 = vector.broadcast %cst_65 : f32 to vector<16x1xf32>
    %116 = arith.cmpf ogt, %114, %115 : vector<16x1xf32>
    %117 = math.rsqrt %114 : vector<16x1xf32>
    %cst_66 = arith.constant 0.000000e+00 : f32
    %118 = vector.broadcast %cst_66 : f32 to vector<16x1xf32>
    %119 = arith.select %116, %117, %118 : vector<16x1xi1>, vector<16x1xf32>
    %120 = vector.broadcast %119 : vector<16x1xf32> to vector<16x8xf32>
    %121 = arith.mulf %120, %112 : vector<16x8xf32>
    %cst_67 = arith.constant dense<0.000000e+00> : vector<16x8xf32>
    %122 = tpu.matmul %110, %121, %cst_67 {dimension_numbers = #tpu.dot_dimension_numbers<[1], [0], [0], [1], [0, 0, 1, 1], [], []>} : vector<16x16xf32>, vector<16x8xf32>, vector<16x8xf32> -> vector<16x8xf32>
    %123 = vector.broadcast %119 : vector<16x1xf32> to vector<16x8xf32>
    %124 = arith.mulf %123, %122 : vector<16x8xf32>
    %125 = tpu.concatenate %124, %112 in 1 : vector<16x8xf32>, vector<16x8xf32> -> vector<16x16xf32>
    %cst_68 = arith.constant dense<0.000000e+00> : vector<16x32xf32>
    %126 = tpu.matmul %125, %0, %cst_68 {dimension_numbers = #tpu.dot_dimension_numbers<[1], [0], [0], [1], [0, 0, 1, 1], [], []>} : vector<16x16xf32>, vector<16x32xf32>, vector<16x32xf32> -> vector<16x32xf32>
    %127 = vector.broadcast %1 : vector<1x32xf32> to vector<16x32xf32>
    %128 = arith.addf %126, %127 : vector<16x32xf32>
    %cst_69 = arith.constant 0.000000e+00 : f32
    %129 = vector.broadcast %cst_69 : f32 to vector<16x32xf32>
    %130 = arith.cmpf ogt, %128, %129 : vector<16x32xf32>
    %cst_70 = arith.constant 0.000000e+00 : f32
    %131 = vector.broadcast %cst_70 : f32 to vector<16x32xf32>
    %132 = arith.minimumf %128, %131 : vector<16x32xf32>
    %133 = math.exp %132 : vector<16x32xf32>
    %cst_71 = arith.constant 1.000000e+00 : f32
    %134 = vector.broadcast %cst_71 : f32 to vector<16x32xf32>
    %135 = arith.subf %133, %134 : vector<16x32xf32>
    %cst_72 = arith.constant 1.67326319 : f32
    %136 = vector.broadcast %cst_72 : f32 to vector<16x32xf32>
    %137 = arith.mulf %136, %135 : vector<16x32xf32>
    %138 = arith.select %130, %128, %137 : vector<16x32xi1>, vector<16x32xf32>
    %cst_73 = arith.constant 1.05070102 : f32
    %139 = vector.broadcast %cst_73 : f32 to vector<16x32xf32>
    %140 = arith.mulf %139, %138 : vector<16x32xf32>
    %cst_74 = arith.constant dense<0.000000e+00> : vector<16x32xf32>
    %141 = tpu.matmul %140, %2, %cst_74 {dimension_numbers = #tpu.dot_dimension_numbers<[1], [0], [0], [1], [0, 0, 1, 1], [], []>} : vector<16x32xf32>, vector<32x32xf32>, vector<16x32xf32> -> vector<16x32xf32>
    %142 = vector.extract_strided_slice %141 {offsets = [0, 0], sizes = [16, 16], strides = [1, 1]} : vector<16x32xf32> to vector<16x16xf32>
    %143 = vector.broadcast %119 : vector<16x1xf32> to vector<16x16xf32>
    %144 = arith.mulf %143, %142 : vector<16x16xf32>
    %cst_75 = arith.constant dense<0.000000e+00> : vector<16x16xf32>
    %145 = tpu.matmul %110, %144, %cst_75 {dimension_numbers = #tpu.dot_dimension_numbers<[1], [0], [0], [1], [0, 0, 1, 1], [], []>} : vector<16x16xf32>, vector<16x16xf32>, vector<16x16xf32> -> vector<16x16xf32>
    %146 = vector.broadcast %119 : vector<16x1xf32> to vector<16x16xf32>
    %147 = arith.mulf %146, %145 : vector<16x16xf32>
    %148 = vector.extract_strided_slice %141 {offsets = [0, 16], sizes = [16, 16], strides = [1, 1]} : vector<16x32xf32> to vector<16x16xf32>
    %149 = arith.addf %147, %148 : vector<16x16xf32>
    %150 = vector.broadcast %3 : vector<1x16xf32> to vector<16x16xf32>
    %151 = arith.addf %149, %150 : vector<16x16xf32>
    %cst_76 = arith.constant 0.000000e+00 : f32
    %152 = vector.broadcast %cst_76 : f32 to vector<16x16xf32>
    %153 = arith.cmpf ogt, %151, %152 : vector<16x16xf32>
    %cst_77 = arith.constant 0.000000e+00 : f32
    %154 = vector.broadcast %cst_77 : f32 to vector<16x16xf32>
    %155 = arith.minimumf %151, %154 : vector<16x16xf32>
    %156 = math.exp %155 : vector<16x16xf32>
    %cst_78 = arith.constant 1.000000e+00 : f32
    %157 = vector.broadcast %cst_78 : f32 to vector<16x16xf32>
    %158 = arith.subf %156, %157 : vector<16x16xf32>
    %cst_79 = arith.constant 1.67326319 : f32
    %159 = vector.broadcast %cst_79 : f32 to vector<16x16xf32>
    %160 = arith.mulf %159, %158 : vector<16x16xf32>
    %161 = arith.select %153, %151, %160 : vector<16x16xi1>, vector<16x16xf32>
    %cst_80 = arith.constant 1.05070102 : f32
    %162 = vector.broadcast %cst_80 : f32 to vector<16x16xf32>
    %163 = arith.mulf %162, %161 : vector<16x16xf32>
    %cst_81 = arith.constant dense<0.000000e+00> : vector<16x2xf32>
    %164 = tpu.matmul %163, %4, %cst_81 {dimension_numbers = #tpu.dot_dimension_numbers<[1], [0], [0], [1], [0, 0, 1, 1], [], []>} : vector<16x16xf32>, vector<16x2xf32>, vector<16x2xf32> -> vector<16x2xf32>
    %165 = vector.broadcast %5 : vector<1x2xf32> to vector<16x2xf32>
    %166 = arith.addf %164, %165 : vector<16x2xf32>
    %cst_82 = arith.constant dense<0xFF800000> : vector<16xf32>
    %167 = vector.multi_reduction <maximumf>, %166, %cst_82 [1] : vector<16x2xf32> to vector<16xf32>
    %168 = vector.shape_cast %167 : vector<16xf32> to vector<16x1xf32>
    %169 = vector.broadcast %168 : vector<16x1xf32> to vector<16x2xf32>
    %170 = arith.subf %166, %169 : vector<16x2xf32>
    %171 = math.exp %170 : vector<16x2xf32>
    %cst_83 = arith.constant dense<0.000000e+00> : vector<16xf32>
    %172 = vector.multi_reduction <add>, %171, %cst_83 [1] : vector<16x2xf32> to vector<16xf32>
    %173 = vector.shape_cast %172 : vector<16xf32> to vector<16x1xf32>
    %174 = vector.broadcast %173 : vector<16x1xf32> to vector<16x2xf32>
    %175 = arith.divf %171, %174 : vector<16x2xf32>
    %c1_84 = arith.constant 1 : index
    %c0_85 = arith.constant 0 : index
    %c0_86 = arith.constant 0 : index
    %176 = vector.load %arg9[%c1_84, %c0_85, %c0_86] : memref<2x16x2xf32, #tpu.memory_space<vmem>>, vector<1x16x2xf32>
    %177 = vector.shape_cast %176 : vector<1x16x2xf32> to vector<16x2xf32>
    %178 = vector.shape_cast %175 : vector<16x2xf32> to vector<1x16x2xf32>
    tpu.vector_store %arg9[%c1_84, %c0_85, %c0_86], %178 {strides = array<i32>} : memref<2x16x2xf32, #tpu.memory_space<vmem>>, vector<1x16x2xf32>,
    %cst_87 = arith.constant dense<0.000000e+00> : vector<2xf32>
    %179 = vector.multi_reduction <add>, %175, %cst_87 [0] : vector<16x2xf32> to vector<2xf32>
    %180 = vector.shape_cast %179 : vector<2xf32> to vector<1x2xf32>
    %181 = vector.shape_cast %114 : vector<16x1xf32> to vector<1x16x1xf32>
    %cst_88 = arith.constant dense<0.000000e+00> : vector<1xf32>
    %182 = vector.multi_reduction <add>, %181, %cst_88 [1, 2] : vector<1x16x1xf32> to vector<1xf32>
    %183 = vector.shape_cast %182 : vector<1xf32> to vector<1x1x1xf32>
    %184 = vector.extract %183[0, 0, 0] : f32 from vector<1x1x1xf32>
    %185 = vector.broadcast %184 : f32 to vector<1x1xf32>
    %cst_89 = arith.constant dense<0.000000e+00> : vector<16x2xf32>
    %186 = tpu.matmul %110, %175, %cst_89 {dimension_numbers = #tpu.dot_dimension_numbers<[1], [0], [0], [1], [0, 0, 1, 1], [], []>} : vector<16x16xf32>, vector<16x2xf32>, vector<16x2xf32> -> vector<16x2xf32>
    %cst_90 = arith.constant dense<0.000000e+00> : vector<2x2xf32>
    %187 = tpu.matmul %175, %186, %cst_90 {dimension_numbers = #tpu.dot_dimension_numbers<[0], [0], [1], [1], [0, 1, 1, 1], [], []>} : vector<16x2xf32>, vector<16x2xf32>, vector<2x2xf32> -> vector<2x2xf32>
    %cst_91 = arith.constant dense<0.000000e+00> : vector<2x1xf32>
    %188 = tpu.matmul %175, %114, %cst_91 {dimension_numbers = #tpu.dot_dimension_numbers<[0], [0], [1], [1], [0, 1, 1, 1], [], []>} : vector<16x2xf32>, vector<16x1xf32>, vector<2x1xf32> -> vector<2x1xf32>
    %cst_92 = arith.constant dense<0.000000e+00> : vector<1x2xf32>
    %189 = tpu.matmul %114, %175, %cst_92 {dimension_numbers = #tpu.dot_dimension_numbers<[0], [0], [1], [1], [0, 1, 1, 1], [], []>} : vector<16x1xf32>, vector<16x2xf32>, vector<1x2xf32> -> vector<1x2xf32>
    %190 = vector.broadcast %188 : vector<2x1xf32> to vector<2x2xf32>
    %191 = vector.broadcast %189 : vector<1x2xf32> to vector<2x2xf32>
    %192 = arith.mulf %190, %191 : vector<2x2xf32>
    %cst_93 = arith.constant 0.000000e+00 : f32
    %193 = vector.broadcast %cst_93 : f32 to vector<8x128xf32>
    %c1_94 = arith.constant 1 : index
    %c0_95 = arith.constant 0 : index
    %c0_96 = arith.constant 0 : index
    %194 = vector.load %arg10[%c1_94, %c0_95, %c0_96] : memref<2x8x128xf32, #tpu.memory_space<vmem>>, vector<1x8x128xf32>
    %195 = vector.shape_cast %194 : vector<1x8x128xf32> to vector<8x128xf32>
    %196 = vector.shape_cast %193 : vector<8x128xf32> to vector<1x8x128xf32>
    tpu.vector_store %arg10[%c1_94, %c0_95, %c0_96], %196 {strides = array<i32>} : memref<2x8x128xf32, #tpu.memory_space<vmem>>, vector<1x8x128xf32>,
    %c1_97 = arith.constant 1 : index
    %c0_98 = arith.constant 0 : index
    %c0_99 = arith.constant 0 : index
    %197 = vector.load %arg10[%c1_97, %c0_98, %c0_99] : memref<2x8x128xf32, #tpu.memory_space<vmem>>, vector<1x2x2xf32>
    %198 = vector.shape_cast %197 : vector<1x2x2xf32> to vector<2x2xf32>
    %199 = vector.shape_cast %187 : vector<2x2xf32> to vector<1x2x2xf32>
    tpu.vector_store %arg10[%c1_97, %c0_98, %c0_99], %199 {strides = array<i32>} : memref<2x8x128xf32, #tpu.memory_space<vmem>>, vector<1x2x2xf32>,
    %c1_100 = arith.constant 1 : index
    %c2_101 = arith.constant 2 : index
    %c0_102 = arith.constant 0 : index
    %200 = vector.load %arg10[%c1_100, %c2_101, %c0_102] : memref<2x8x128xf32, #tpu.memory_space<vmem>>, vector<1x2x2xf32>
    %201 = vector.shape_cast %200 : vector<1x2x2xf32> to vector<2x2xf32>
    %202 = vector.shape_cast %192 : vector<2x2xf32> to vector<1x2x2xf32>
    tpu.vector_store %arg10[%c1_100, %c2_101, %c0_102], %202 {strides = array<i32>} : memref<2x8x128xf32, #tpu.memory_space<vmem>>, vector<1x2x2xf32>,
    %c1_103 = arith.constant 1 : index
    %c4_104 = arith.constant 4 : index
    %c0_105 = arith.constant 0 : index
    %203 = vector.load %arg10[%c1_103, %c4_104, %c0_105] : memref<2x8x128xf32, #tpu.memory_space<vmem>>, vector<1x1x2xf32>
    %204 = vector.shape_cast %203 : vector<1x1x2xf32> to vector<1x2xf32>
    %205 = vector.shape_cast %180 : vector<1x2xf32> to vector<1x1x2xf32>
    tpu.vector_store %arg10[%c1_103, %c4_104, %c0_105], %205 {strides = array<i32>} : memref<2x8x128xf32, #tpu.memory_space<vmem>>, vector<1x1x2xf32>,
    %cst_106 = arith.constant 1.000000e+00 : f32
    %206 = vector.broadcast %cst_106 : f32 to vector<1x2xf32>
    %207 = vector.broadcast %185 : vector<1x1xf32> to vector<1x2xf32>
    %208 = arith.mulf %207, %206 : vector<1x2xf32>
    %c1_107 = arith.constant 1 : index
    %c5_108 = arith.constant 5 : index
    %c0_109 = arith.constant 0 : index
    %209 = vector.load %arg10[%c1_107, %c5_108, %c0_109] : memref<2x8x128xf32, #tpu.memory_space<vmem>>, vector<1x1x2xf32>
    %210 = vector.shape_cast %209 : vector<1x1x2xf32> to vector<1x2xf32>
    %211 = vector.shape_cast %208 : vector<1x2xf32> to vector<1x1x2xf32>
    tpu.vector_store %arg10[%c1_107, %c5_108, %c0_109], %211 {strides = array<i32>} : memref<2x8x128xf32, #tpu.memory_space<vmem>>, vector<1x1x2xf32>,
    return
  }
  func.func @transform_0(%arg0: i32) -> (i32, i32, i32) {
    %c0_i32 = arith.constant 0 : i32
    %c0_i32_0 = arith.constant 0 : i32
    %c0_i32_1 = arith.constant 0 : i32
    return %arg0, %c0_i32, %c0_i32_0 : i32, i32, i32
  }
  func.func @transform_1(%arg0: i32) -> (i32, i32, i32) {
    %c0_i32 = arith.constant 0 : i32
    %c0_i32_0 = arith.constant 0 : i32
    %c0_i32_1 = arith.constant 0 : i32
    return %arg0, %c0_i32, %c0_i32_0 : i32, i32, i32
  }
  func.func @transform_2(%arg0: i32) -> (i32, i32) {
    %c0_i32 = arith.constant 0 : i32
    %c0_i32_0 = arith.constant 0 : i32
    %c0_i32_1 = arith.constant 0 : i32
    return %c0_i32, %c0_i32_0 : i32, i32
  }
  func.func @transform_3(%arg0: i32) -> (i32, i32) {
    %c0_i32 = arith.constant 0 : i32
    %c0_i32_0 = arith.constant 0 : i32
    %c0_i32_1 = arith.constant 0 : i32
    return %c0_i32, %c0_i32_0 : i32, i32
  }
  func.func @transform_4(%arg0: i32) -> (i32, i32) {
    %c0_i32 = arith.constant 0 : i32
    %c0_i32_0 = arith.constant 0 : i32
    %c0_i32_1 = arith.constant 0 : i32
    return %c0_i32, %c0_i32_0 : i32, i32
  }
  func.func @transform_5(%arg0: i32) -> (i32, i32) {
    %c0_i32 = arith.constant 0 : i32
    %c0_i32_0 = arith.constant 0 : i32
    %c0_i32_1 = arith.constant 0 : i32
    return %c0_i32, %c0_i32_0 : i32, i32
  }
  func.func @transform_6(%arg0: i32) -> (i32, i32) {
    %c0_i32 = arith.constant 0 : i32
    %c0_i32_0 = arith.constant 0 : i32
    %c0_i32_1 = arith.constant 0 : i32
    return %c0_i32, %c0_i32_0 : i32, i32
  }
  func.func @transform_7(%arg0: i32) -> (i32, i32) {
    %c0_i32 = arith.constant 0 : i32
    %c0_i32_0 = arith.constant 0 : i32
    %c0_i32_1 = arith.constant 0 : i32
    return %c0_i32, %c0_i32_0 : i32, i32
  }
  func.func @transform_8(%arg0: i32) -> (i32, i32, i32) {
    %c0_i32 = arith.constant 0 : i32
    %c0_i32_0 = arith.constant 0 : i32
    %c0_i32_1 = arith.constant 0 : i32
    return %arg0, %c0_i32, %c0_i32_0 : i32, i32, i32
  }
  func.func @transform_9(%arg0: i32) -> (i32, i32, i32) {
    %c0_i32 = arith.constant 0 : i32
    %c0_i32_0 = arith.constant 0 : i32
    %c0_i32_1 = arith.constant 0 : i32
    return %arg0, %c0_i32, %c0_i32_0 : i32, i32, i32
  }
}

</mosaic_0001>

<llo_original>
// kernel: _lambda_.1
$region0: #{_lambda_.1}
  #allocation0 [shape = 'u32[]', space=smem, size = 0x4, offset = 0x4, fixed_abs, tag = 'smem constant byte address 0x4 - core index']
  #allocation1 [shape = 'u32[144,128]{1,0:T(1,128)}', space=vmem, size = 0x12000, scoped, tag = 'internal scratch']
  %s0 = inlined_call_operand.vmem [shape: f32[2,16,16], index: 0, kind: input, shape index: {}]
  %s1 = inlined_call_operand.vmem [shape: f32[2,16,8], index: 1, kind: input, shape index: {}]
  %s2 = inlined_call_operand.hbm [shape: f32[16,32], index: 2, kind: input, shape index: {}]
  %s3 = inlined_call_operand.vmem [shape: f32[1,32], index: 3, kind: input, shape index: {}]
  %s4 = inlined_call_operand.vmem [shape: f32[32,32], index: 4, kind: input, shape index: {}]
  %s5 = inlined_call_operand.vmem [shape: f32[1,16], index: 5, kind: input, shape index: {}]
  %s6 = inlined_call_operand.hbm [shape: f32[16,2], index: 6, kind: input, shape index: {}]
  %s7 = inlined_call_operand.vmem [shape: f32[1,2], index: 7, kind: input, shape index: {}]
  %s8 = inlined_call_operand.vmem [shape: f32[2,16,2], index: 8, kind: output, shape index: {0}]
  %s9 = inlined_call_operand.vmem [shape: f32[2,8,128], index: 9, kind: output, shape index: {1}]
  %10 = xla_tuple %s8, %s9
  %s11 = sld [smem:[#allocation0]]
  $region58: #{_lambda_.1} parent=0
    _
  %s13 = ssub.s32 1, %s11
  %s14 = scalar_select 0, %s13, %s11
  $region1: #{_lambda_.1} parent=0
    #allocation2 [shape = 'u8[8192]{0}', space=vmem, size = 0x2000, scoped, tag = 'input window, operand 2, single buffered']
    #allocation3 [shape = 's32[1]{0}', space=sflag, size = 0x4, scoped, tag = 'scoped memory for _lambda_.1']
    #allocation4 [shape = 'u8[8192]{0}', space=vmem, size = 0x2000, scoped, tag = 'input window, operand 6, single buffered']
    #allocation5 [shape = 's32[1]{0}', space=sflag, size = 0x4, scoped, tag = 'scoped memory for _lambda_.1']
    %15 = vsyncpa [#allocation3], 0
    %16 = vsyncpa [#allocation5], 0
    // Predicated region
    $region2: #{_lambda_.1} parent=1 // pred_check
      _
    $region3: #{_lambda_.1} parent=1 // pred_check_branch
      %18 = sbr.rel (0) target = $region5
    $region4: #{_lambda_.1} parent=1 // pred_region
      _
    $region5: #{_lambda_.1} parent=1 // pred_fallthru
      _
    // Predicated region
    $region6: #{_lambda_.1} parent=1 // pred_check
      _
    $region7: #{_lambda_.1} parent=1 // pred_check_branch
      %20 = sbr.rel (0) target = $region9
    $region8: #{_lambda_.1} parent=1 // pred_region
      _
    $region9: #{_lambda_.1} parent=1 // pred_fallthru
      _
    // Predicated region
    $region10: #{_lambda_.1} parent=1 // pred_check
      _
    $region11: #{_lambda_.1} parent=1 // pred_check_branch
      %22 = sbr.rel (0) target = $region13
    $region12: #{_lambda_.1} parent=1 // pred_region
      %s24 = ssub.s32 256, 256
      %25 = vsyncadd [#allocation3], %s24
      %s26 = sshll.u32 [#allocation2], 4
      %s27 = int_to_ptr.vmem [resolvable:$true] %s26
      %32 = dma.hbm_to_vmem [thread:$0]  %s2, 256, %s27, [#allocation3], 128, 128, 8
    $region13: #{_lambda_.1} parent=1 // pred_fallthru
      _
    // Predicated region
    $region14: #{_lambda_.1} parent=1 // pred_check
      _
    $region15: #{_lambda_.1} parent=1 // pred_check_branch
      %34 = sbr.rel (0) target = $region17
    $region16: #{_lambda_.1} parent=1 // pred_region
      _
    $region17: #{_lambda_.1} parent=1 // pred_fallthru
      _
    // Predicated region
    $region18: #{_lambda_.1} parent=1 // pred_check
      _
    $region19: #{_lambda_.1} parent=1 // pred_check_branch
      %36 = sbr.rel (0) target = $region21
    $region20: #{_lambda_.1} parent=1 // pred_region
      _
    $region21: #{_lambda_.1} parent=1 // pred_fallthru
      _
    // Predicated region
    $region22: #{_lambda_.1} parent=1 // pred_check
      _
    $region23: #{_lambda_.1} parent=1 // pred_check_branch
      %38 = sbr.rel (0) target = $region25
    $region24: #{_lambda_.1} parent=1 // pred_region
      _
    $region25: #{_lambda_.1} parent=1 // pred_fallthru
      _
    // Predicated region
    $region26: #{_lambda_.1} parent=1 // pred_check
      _
    $region27: #{_lambda_.1} parent=1 // pred_check_branch
      %40 = sbr.rel (0) target = $region29
    $region28: #{_lambda_.1} parent=1 // pred_region
      %s42 = ssub.s32 256, 256
      %43 = vsyncadd [#allocation5], %s42
      %s44 = sshll.u32 [#allocation4], 4
      %s45 = int_to_ptr.vmem [resolvable:$true] %s44
      %50 = dma.hbm_to_vmem [thread:$0]  %s6, 256, %s45, [#allocation5], 128, 128, 8
    $region29: #{_lambda_.1} parent=1 // pred_fallthru
      _
    // Predicated region
    $region30: #{_lambda_.1} parent=1 // pred_check
      _
    $region31: #{_lambda_.1} parent=1 // pred_check_branch
      %52 = sbr.rel (0) target = $region33
    $region32: #{_lambda_.1} parent=1 // pred_region
      _
    $region33: #{_lambda_.1} parent=1 // pred_fallthru
      _
    // Predicated region
    $region34: #{_lambda_.1} parent=1 // pred_check
      _
    $region35: #{_lambda_.1} parent=1 // pred_check_branch
      %54 = sbr.rel (0) target = $region37
    $region36: #{_lambda_.1} parent=1 // pred_region
      %55 = dma.done [#allocation3], 256
    $region37: #{_lambda_.1} parent=1 // pred_fallthru
      _
    // Predicated region
    $region38: #{_lambda_.1} parent=1 // pred_check
      _
    $region39: #{_lambda_.1} parent=1 // pred_check_branch
      %57 = sbr.rel (0) target = $region41
    $region40: #{_lambda_.1} parent=1 // pred_region
      %58 = dma.done [#allocation5], 256
    $region41: #{_lambda_.1} parent=1 // pred_fallthru
      _
    %v59 = vld [vmem:[#allocation2] sm:$0xff]
    %v60 = vld [vmem:[#allocation2 + $0x8] sm:$0xff]
    %v61 = vld [vmem:[%s3] sm:$0x1]
    %v62 = vld [vmem:[%s4] sm:$0xff]
    %v63 = vld [vmem:[%s4 + $0x8] sm:$0xff]
    %v64 = vld [vmem:[%s4 + $0x10] sm:$0xff]
    %v65 = vld [vmem:[%s4 + $0x18] sm:$0xff]
    %v66 = vld [vmem:[%s5] sm:$0x1]
    %v67 = vld [vmem:[#allocation4] sm:$0xff]
    %v68 = vld [vmem:[#allocation4 + $0x8] sm:$0xff]
    %v69 = vld [vmem:[%s7] sm:$0x1]
    %v70 = vld [vmem:[%s0] sm:$0xff]
    %v71 = vld [vmem:[%s0 + $0x8] sm:$0xff]
    %v72 = vld [vmem:[%s1] sm:$0xff]
    %v73 = vld [vmem:[%s1 + $0x8] sm:$0xff]
    %vm74 = vcmask 130048
    %v75 = vsel %vm74, %v70, 0.0
    %76 = vadd.xlane.f32.xlu0 %v75
    %v77 = vpop.xlane.xlu0 %76
    %v78 = vsel %vm74, %v71, 0.0
    %79 = vadd.xlane.f32.xlu0 %v78
    %v80 = vpop.xlane.xlu0 %79
    %vm81 = vcmp.gt.f32.partialorder %v77, 0.0
    %vm82 = vcmp.gt.f32.partialorder %v80, 0.0
    %v83 = vrsqrt.pop %v77
    %v84 = vrsqrt.pop %v80
    %v85 = vsel %vm81, %v83, 0.0
    %v86 = vsel %vm82, %v84, 0.0
    %v87 = vmul.f32 %v85, %v72
    %v88 = vmul.f32 %v86, %v73
    %v90 = vsel %vm74, %v70, 0
    %v93 = vsel %vm74, %v71, 0
    %95 = vmatprep.subr.mxu0 0.0
    %96 = vmatpush1.msra.mxu0 %v87
    %97 = vmatprep.subr.mxu0 0.0
    %98 = vmatpush1.msra.mxu0 %v88
    %99 = vmatprep.subr.mxu0 0.0
    %100 = vmatpush1.msra.mxu0 0.0
    %101 = vmatprep.subr.mxu0 0.0
    %102 = vmatpush1.msra.mxu0 0.0
    %103 = vmatprep.subr.mxu0 0.0
    %104 = vmatpush1.msra.mxu0 0.0
    %105 = vmatprep.subr.mxu0 0.0
    %106 = vmatpush1.msra.mxu0 0.0
    %107 = vmatprep.subr.mxu0 0.0
    %108 = vmatpush1.msra.mxu0 0.0
    %109 = vmatprep.subr.mxu0 0.0
    %110 = vmatpush1.msra.mxu0 0.0
    %111 = vmatprep.subr.mxu0 0.0
    %112 = vmatpush1.msra.mxu0 0.0
    %113 = vmatprep.subr.mxu0 0.0
    %114 = vmatpush1.msra.mxu0 0.0
    %115 = vmatprep.subr.mxu0 0.0
    %116 = vmatpush1.msra.mxu0 0.0
    %117 = vmatprep.subr.mxu0 0.0
    %118 = vmatpush1.msra.mxu0 0.0
    %119 = vmatprep.subr.mxu0 0.0
    %120 = vmatpush1.msra.mxu0 0.0
    %121 = vmatprep.subr.mxu0 0.0
    %122 = vmatpush1.msra.mxu0 0.0
    %123 = vmatprep.subr.mxu0 0.0
    %124 = vmatpush1.msra.mxu0 0.0
    %125 = vmatprep.subr.mxu0 0.0
    %126 = vmatpush1.msra.mxu0 0.0
    %127 = vmatprep.subr.mxu0 0.0
    %128 = vmatpush1.msra.mxu0 0.0
    %129 = vmatprep.subr.mxu0 0.0
    %130 = vmatpush1.msra.mxu0 0.0
    %131 = vmatprep.subr.mxu0 0.0
    %132 = vmatpush1.msra.mxu0 0.0
    %133 = vmatprep.subr.mxu0 0.0
    %134 = vmatpush1.msra.mxu0 0.0
    %135 = vmatprep.subr.mxu0 0.0
    %136 = vmatpush1.msra.mxu0 0.0
    %137 = vmatprep.subr.mxu0 0.0
    %138 = vmatpush1.msra.mxu0 0.0
    %139 = vmatprep.subr.mxu0 0.0
    %140 = vmatpush1.msra.mxu0 0.0
    %141 = vmatprep.subr.mxu0 0.0
    %142 = vmatpush1.msra.mxu0 0.0
    %143 = vmatprep.subr.mxu0 0.0
    %144 = vmatpush1.msra.mxu0 0.0
    %145 = vmatprep.subr.mxu0 0.0
    %146 = vmatpush1.msra.mxu0 0.0
    %147 = vmatprep.subr.mxu0 0.0
    %148 = vmatpush1.msra.mxu0 0.0
    %149 = vmatprep.subr.mxu0 0.0
    %150 = vmatpush1.msra.mxu0 0.0
    %151 = vmatprep.subr.mxu0 0.0
    %152 = vmatpush1.msra.mxu0 0.0
    %153 = vmatprep.subr.mxu0 0.0
    %154 = vmatpush1.msra.mxu0 0.0
    %155 = vmatprep.subr.mxu0 0.0
    %156 = vmatpush1.msra.mxu0 0.0
    %157 = vmatprep.subr.mxu0 0.0
    %158 = vmatpush1.msra.mxu0 0.0
    %159 = vmatprep.mubr.f32.mxu0 0.0
    %160 = vmatmul.mubr.f32.gmra.mrb[0].mxu0 %v90
    %v161 = vpop.f32.mrb[0].mxu0
    %v162 = vadd.f32 0.0, %v161
    %v163 = vpop.f32.mrb[0].mxu0
    %164 = vmatprep.mubr.f32.mxu0 0.0
    %165 = vmatmul.mubr.f32.gmra.mrb[0].mxu0 %v93
    %v166 = vpop.f32.mrb[0].mxu0
    %v167 = vadd.f32 0.0, %v166
    %v168 = vpop.f32.mrb[0].mxu0
    %169 = vdwg.mxu0
    %v170 = vmul.f32 %v85, %v162
    %v171 = vmul.f32 %v86, %v167
    %174 = vrot.lane.b32.xlu0 %v72, 8
    %v175 = vpop.permute.xlu0 %174
    %176 = vrot.lane.b32.xlu0 %v73, 8
    %v177 = vpop.permute.xlu0 %176
    %vm180 = vcmask 64512
    %v181 = vsel %vm180, %v170, %v175
    %v182 = vsel %vm180, %v171, %v177
    %v184 = vlaneseq
    %v185 = vshrl.u32 %v184, 7
    %v186 = vsub.s32 0, %v185
    %v187 = vrot.slane %v61, %v186
    %v190 = vsel %vm74, %v181, 0
    %v193 = vsel %vm74, %v182, 0
    %195 = vmatprep.subr.mxu0 0.0
    %196 = vmatpush1.msra.mxu0 %v59
    %197 = vmatprep.subr.mxu0 0.0
    %198 = vmatpush1.msra.mxu0 %v60
    %199 = vmatprep.subr.mxu0 0.0
    %200 = vmatpush1.msra.mxu0 0.0
    %201 = vmatprep.subr.mxu0 0.0
    %202 = vmatpush1.msra.mxu0 0.0
    %203 = vmatprep.subr.mxu0 0.0
    %204 = vmatpush1.msra.mxu0 0.0
    %205 = vmatprep.subr.mxu0 0.0
    %206 = vmatpush1.msra.mxu0 0.0
    %207 = vmatprep.subr.mxu0 0.0
    %208 = vmatpush1.msra.mxu0 0.0
    %209 = vmatprep.subr.mxu0 0.0
    %210 = vmatpush1.msra.mxu0 0.0
    %211 = vmatprep.subr.mxu0 0.0
    %212 = vmatpush1.msra.mxu0 0.0
    %213 = vmatprep.subr.mxu0 0.0
    %214 = vmatpush1.msra.mxu0 0.0
    %215 = vmatprep.subr.mxu0 0.0
    %216 = vmatpush1.msra.mxu0 0.0
    %217 = vmatprep.subr.mxu0 0.0
    %218 = vmatpush1.msra.mxu0 0.0
    %219 = vmatprep.subr.mxu0 0.0
    %220 = vmatpush1.msra.mxu0 0.0
    %221 = vmatprep.subr.mxu0 0.0
    %222 = vmatpush1.msra.mxu0 0.0
    %223 = vmatprep.subr.mxu0 0.0
    %224 = vmatpush1.msra.mxu0 0.0
    %225 = vmatprep.subr.mxu0 0.0
    %226 = vmatpush1.msra.mxu0 0.0
    %227 = vmatprep.subr.mxu0 0.0
    %228 = vmatpush1.msra.mxu0 0.0
    %229 = vmatprep.subr.mxu0 0.0
    %230 = vmatpush1.msra.mxu0 0.0
    %231 = vmatprep.subr.mxu0 0.0
    %232 = vmatpush1.msra.mxu0 0.0
    %233 = vmatprep.subr.mxu0 0.0
    %234 = vmatpush1.msra.mxu0 0.0
    %235 = vmatprep.subr.mxu0 0.0
    %236 = vmatpush1.msra.mxu0 0.0
    %237 = vmatprep.subr.mxu0 0.0
    %238 = vmatpush1.msra.mxu0 0.0
    %239 = vmatprep.subr.mxu0 0.0
    %240 = vmatpush1.msra.mxu0 0.0
    %241 = vmatprep.subr.mxu0 0.0
    %242 = vmatpush1.msra.mxu0 0.0
    %243 = vmatprep.subr.mxu0 0.0
    %244 = vmatpush1.msra.mxu0 0.0
    %245 = vmatprep.subr.mxu0 0.0
    %246 = vmatpush1.msra.mxu0 0.0
    %247 = vmatprep.subr.mxu0 0.0
    %248 = vmatpush1.msra.mxu0 0.0
    %249 = vmatprep.subr.mxu0 0.0
    %250 = vmatpush1.msra.mxu0 0.0
    %251 = vmatprep.subr.mxu0 0.0
    %252 = vmatpush1.msra.mxu0 0.0
    %253 = vmatprep.subr.mxu0 0.0
    %254 = vmatpush1.msra.mxu0 0.0
    %255 = vmatprep.subr.mxu0 0.0
    %256 = vmatpush1.msra.mxu0 0.0
    %257 = vmatprep.subr.mxu0 0.0
    %258 = vmatpush1.msra.mxu0 0.0
    %259 = vmatprep.mubr.f32.mxu0 0.0
    %260 = vmatmul.mubr.f32.gmra.mrb[0].mxu0 %v190
    %v261 = vpop.f32.mrb[0].mxu0
    %v262 = vadd.f32 %v187, %v261
    %v263 = vpop.f32.mrb[0].mxu0
    %264 = vmatprep.mubr.f32.mxu0 0.0
    %265 = vmatmul.mubr.f32.gmra.mrb[0].mxu0 %v193
    %v266 = vpop.f32.mrb[0].mxu0
    %v267 = vadd.f32 %v187, %v266
    %v268 = vpop.f32.mrb[0].mxu0
    %269 = vdwg.mxu0
    %vm270 = vcmp.gt.f32.partialorder %v262, 0.0
    %vm271 = vcmp.gt.f32.partialorder %v267, 0.0
    %v272 = vmin.f32 %v262, 0.0
    %v273 = vmin.f32 %v267, 0.0
    %v274 = vmul.f32 %v272, 1.442695
    %v275 = vpow.pop %v274
    %v276 = vmul.f32 %v273, 1.442695
    %v277 = vpow.pop %v276
    %v278 = vsub.f32 %v275, 1.0
    %v279 = vsub.f32 %v277, 1.0
    %v280 = vmul.f32 %v278, 1.6732632
    %v281 = vmul.f32 %v279, 1.6732632
    %v282 = vsel %vm270, %v262, %v280
    %v283 = vsel %vm271, %v267, %v281
    %v284 = vmul.f32 %v282, 1.050701
    %v285 = vmul.f32 %v283, 1.050701
    %vm286 = vcmask 261120
    %v288 = vsel %vm286, %v284, 0
    %v291 = vsel %vm286, %v285, 0
    %293 = vmatprep.subr.mxu0 0.0
    %294 = vmatpush1.msra.mxu0 %v62
    %295 = vmatprep.subr.mxu0 0.0
    %296 = vmatpush1.msra.mxu0 %v63
    %297 = vmatprep.subr.mxu0 0.0
    %298 = vmatpush1.msra.mxu0 %v64
    %299 = vmatprep.subr.mxu0 0.0
    %300 = vmatpush1.msra.mxu0 %v65
    %301 = vmatprep.subr.mxu0 0.0
    %302 = vmatpush1.msra.mxu0 0.0
    %303 = vmatprep.subr.mxu0 0.0
    %304 = vmatpush1.msra.mxu0 0.0
    %305 = vmatprep.subr.mxu0 0.0
    %306 = vmatpush1.msra.mxu0 0.0
    %307 = vmatprep.subr.mxu0 0.0
    %308 = vmatpush1.msra.mxu0 0.0
    %309 = vmatprep.subr.mxu0 0.0
    %310 = vmatpush1.msra.mxu0 0.0
    %311 = vmatprep.subr.mxu0 0.0
    %312 = vmatpush1.msra.mxu0 0.0
    %313 = vmatprep.subr.mxu0 0.0
    %314 = vmatpush1.msra.mxu0 0.0
    %315 = vmatprep.subr.mxu0 0.0
    %316 = vmatpush1.msra.mxu0 0.0
    %317 = vmatprep.subr.mxu0 0.0
    %318 = vmatpush1.msra.mxu0 0.0
    %319 = vmatprep.subr.mxu0 0.0
    %320 = vmatpush1.msra.mxu0 0.0
    %321 = vmatprep.subr.mxu0 0.0
    %322 = vmatpush1.msra.mxu0 0.0
    %323 = vmatprep.subr.mxu0 0.0
    %324 = vmatpush1.msra.mxu0 0.0
    %325 = vmatprep.subr.mxu0 0.0
    %326 = vmatpush1.msra.mxu0 0.0
    %327 = vmatprep.subr.mxu0 0.0
    %328 = vmatpush1.msra.mxu0 0.0
    %329 = vmatprep.subr.mxu0 0.0
    %330 = vmatpush1.msra.mxu0 0.0
    %331 = vmatprep.subr.mxu0 0.0
    %332 = vmatpush1.msra.mxu0 0.0
    %333 = vmatprep.subr.mxu0 0.0
    %334 = vmatpush1.msra.mxu0 0.0
    %335 = vmatprep.subr.mxu0 0.0
    %336 = vmatpush1.msra.mxu0 0.0
    %337 = vmatprep.subr.mxu0 0.0
    %338 = vmatpush1.msra.mxu0 0.0
    %339 = vmatprep.subr.mxu0 0.0
    %340 = vmatpush1.msra.mxu0 0.0
    %341 = vmatprep.subr.mxu0 0.0
    %342 = vmatpush1.msra.mxu0 0.0
    %343 = vmatprep.subr.mxu0 0.0
    %344 = vmatpush1.msra.mxu0 0.0
    %345 = vmatprep.subr.mxu0 0.0
    %346 = vmatpush1.msra.mxu0 0.0
    %347 = vmatprep.subr.mxu0 0.0
    %348 = vmatpush1.msra.mxu0 0.0
    %349 = vmatprep.subr.mxu0 0.0
    %350 = vmatpush1.msra.mxu0 0.0
    %351 = vmatprep.subr.mxu0 0.0
    %352 = vmatpush1.msra.mxu0 0.0
    %353 = vmatprep.subr.mxu0 0.0
    %354 = vmatpush1.msra.mxu0 0.0
    %355 = vmatprep.subr.mxu0 0.0
    %356 = vmatpush1.msra.mxu0 0.0
    %357 = vmatprep.mubr.f32.mxu0 0.0
    %358 = vmatmul.mubr.f32.gmra.mrb[0].mxu0 %v288
    %v359 = vpop.f32.mrb[0].mxu0
    %v360 = vadd.f32 0.0, %v359
    %v361 = vpop.f32.mrb[0].mxu0
    %362 = vmatprep.mubr.f32.mxu0 0.0
    %363 = vmatmul.mubr.f32.gmra.mrb[0].mxu0 %v291
    %v364 = vpop.f32.mrb[0].mxu0
    %v365 = vadd.f32 0.0, %v364
    %v366 = vpop.f32.mrb[0].mxu0
    %367 = vdwg.mxu0
    %v368 = vmul.f32 %v85, %v360
    %v369 = vmul.f32 %v86, %v365
    %370 = vmatprep.subr.mxu0 0.0
    %371 = vmatpush1.msra.mxu0 %v368
    %372 = vmatprep.subr.mxu0 0.0
    %373 = vmatpush1.msra.mxu0 %v369
    %374 = vmatprep.subr.mxu0 0.0
    %375 = vmatpush1.msra.mxu0 0.0
    %376 = vmatprep.subr.mxu0 0.0
    %377 = vmatpush1.msra.mxu0 0.0
    %378 = vmatprep.subr.mxu0 0.0
    %379 = vmatpush1.msra.mxu0 0.0
    %380 = vmatprep.subr.mxu0 0.0
    %381 = vmatpush1.msra.mxu0 0.0
    %382 = vmatprep.subr.mxu0 0.0
    %383 = vmatpush1.msra.mxu0 0.0
    %384 = vmatprep.subr.mxu0 0.0
    %385 = vmatpush1.msra.mxu0 0.0
    %386 = vmatprep.subr.mxu0 0.0
    %387 = vmatpush1.msra.mxu0 0.0
    %388 = vmatprep.subr.mxu0 0.0
    %389 = vmatpush1.msra.mxu0 0.0
    %390 = vmatprep.subr.mxu0 0.0
    %391 = vmatpush1.msra.mxu0 0.0
    %392 = vmatprep.subr.mxu0 0.0
    %393 = vmatpush1.msra.mxu0 0.0
    %394 = vmatprep.subr.mxu0 0.0
    %395 = vmatpush1.msra.mxu0 0.0
    %396 = vmatprep.subr.mxu0 0.0
    %397 = vmatpush1.msra.mxu0 0.0
    %398 = vmatprep.subr.mxu0 0.0
    %399 = vmatpush1.msra.mxu0 0.0
    %400 = vmatprep.subr.mxu0 0.0
    %401 = vmatpush1.msra.mxu0 0.0
    %402 = vmatprep.subr.mxu0 0.0
    %403 = vmatpush1.msra.mxu0 0.0
    %404 = vmatprep.subr.mxu0 0.0
    %405 = vmatpush1.msra.mxu0 0.0
    %406 = vmatprep.subr.mxu0 0.0
    %407 = vmatpush1.msra.mxu0 0.0
    %408 = vmatprep.subr.mxu0 0.0
    %409 = vmatpush1.msra.mxu0 0.0
    %410 = vmatprep.subr.mxu0 0.0
    %411 = vmatpush1.msra.mxu0 0.0
    %412 = vmatprep.subr.mxu0 0.0
    %413 = vmatpush1.msra.mxu0 0.0
    %414 = vmatprep.subr.mxu0 0.0
    %415 = vmatpush1.msra.mxu0 0.0
    %416 = vmatprep.subr.mxu0 0.0
    %417 = vmatpush1.msra.mxu0 0.0
    %418 = vmatprep.subr.mxu0 0.0
    %419 = vmatpush1.msra.mxu0 0.0
    %420 = vmatprep.subr.mxu0 0.0
    %421 = vmatpush1.msra.mxu0 0.0
    %422 = vmatprep.subr.mxu0 0.0
    %423 = vmatpush1.msra.mxu0 0.0
    %424 = vmatprep.subr.mxu0 0.0
    %425 = vmatpush1.msra.mxu0 0.0
    %426 = vmatprep.subr.mxu0 0.0
    %427 = vmatpush1.msra.mxu0 0.0
    %428 = vmatprep.subr.mxu0 0.0
    %429 = vmatpush1.msra.mxu0 0.0
    %430 = vmatprep.subr.mxu0 0.0
    %431 = vmatpush1.msra.mxu0 0.0
    %432 = vmatprep.subr.mxu0 0.0
    %433 = vmatpush1.msra.mxu0 0.0
    %434 = vmatprep.mubr.f32.mxu0 0.0
    %435 = vmatmul.mubr.f32.gmra.mrb[0].mxu0 %v90
    %v436 = vpop.f32.mrb[0].mxu0
    %v437 = vadd.f32 0.0, %v436
    %v438 = vpop.f32.mrb[0].mxu0
    %439 = vmatprep.mubr.f32.mxu0 0.0
    %440 = vmatmul.mubr.f32.gmra.mrb[0].mxu0 %v93
    %v441 = vpop.f32.mrb[0].mxu0
    %v442 = vadd.f32 0.0, %v441
    %v443 = vpop.f32.mrb[0].mxu0
    %444 = vdwg.mxu0
    %v445 = vmul.f32 %v85, %v437
    %v446 = vmul.f32 %v86, %v442
    %449 = vrot.lane.b32.xlu0 %v360, 112
    %v450 = vpop.permute.xlu0 %449
    %451 = vrot.lane.b32.xlu0 %v365, 112
    %v452 = vpop.permute.xlu0 %451
    %v455 = vadd.f32 %v445, %v450
    %v456 = vadd.f32 %v446, %v452
    %v458 = vlaneseq
    %v459 = vshrl.u32 %v458, 7
    %v460 = vsub.s32 0, %v459
    %v461 = vrot.slane %v66, %v460
    %v463 = vadd.f32 %v455, %v461
    %v464 = vadd.f32 %v456, %v461
    %vm465 = vcmp.gt.f32.partialorder %v463, 0.0
    %vm466 = vcmp.gt.f32.partialorder %v464, 0.0
    %v467 = vmin.f32 %v463, 0.0
    %v468 = vmin.f32 %v464, 0.0
    %v469 = vmul.f32 %v467, 1.442695
    %v470 = vpow.pop %v469
    %v471 = vmul.f32 %v468, 1.442695
    %v472 = vpow.pop %v471
    %v473 = vsub.f32 %v470, 1.0
    %v474 = vsub.f32 %v472, 1.0
    %v475 = vmul.f32 %v473, 1.6732632
    %v476 = vmul.f32 %v474, 1.6732632
    %v477 = vsel %vm465, %v463, %v475
    %v478 = vsel %vm466, %v464, %v476
    %v479 = vmul.f32 %v477, 1.050701
    %v480 = vmul.f32 %v478, 1.050701
    %v482 = vlaneseq
    %v483 = vshrl.u32 %v482, 7
    %v484 = vsub.s32 0, %v483
    %v485 = vrot.slane %v69, %v484
    %v488 = vsel %vm74, %v479, 0
    %v491 = vsel %vm74, %v480, 0
    %493 = vmatprep.subr.mxu0 0.0
    %494 = vmatpush1.msra.mxu0 %v67
    %495 = vmatprep.subr.mxu0 0.0
    %496 = vmatpush1.msra.mxu0 %v68
    %497 = vmatprep.subr.mxu0 0.0
    %498 = vmatpush1.msra.mxu0 0.0
    %499 = vmatprep.subr.mxu0 0.0
    %500 = vmatpush1.msra.mxu0 0.0
    %501 = vmatprep.subr.mxu0 0.0
    %502 = vmatpush1.msra.mxu0 0.0
    %503 = vmatprep.subr.mxu0 0.0
    %504 = vmatpush1.msra.mxu0 0.0
    %505 = vmatprep.subr.mxu0 0.0
    %506 = vmatpush1.msra.mxu0 0.0
    %507 = vmatprep.subr.mxu0 0.0
    %508 = vmatpush1.msra.mxu0 0.0
    %509 = vmatprep.subr.mxu0 0.0
    %510 = vmatpush1.msra.mxu0 0.0
    %511 = vmatprep.subr.mxu0 0.0
    %512 = vmatpush1.msra.mxu0 0.0
    %513 = vmatprep.subr.mxu0 0.0
    %514 = vmatpush1.msra.mxu0 0.0
    %515 = vmatprep.subr.mxu0 0.0
    %516 = vmatpush1.msra.mxu0 0.0
    %517 = vmatprep.subr.mxu0 0.0
    %518 = vmatpush1.msra.mxu0 0.0
    %519 = vmatprep.subr.mxu0 0.0
    %520 = vmatpush1.msra.mxu0 0.0
    %521 = vmatprep.subr.mxu0 0.0
    %522 = vmatpush1.msra.mxu0 0.0
    %523 = vmatprep.subr.mxu0 0.0
    %524 = vmatpush1.msra.mxu0 0.0
    %525 = vmatprep.subr.mxu0 0.0
    %526 = vmatpush1.msra.mxu0 0.0
    %527 = vmatprep.subr.mxu0 0.0
    %528 = vmatpush1.msra.mxu0 0.0
    %529 = vmatprep.subr.mxu0 0.0
    %530 = vmatpush1.msra.mxu0 0.0
    %531 = vmatprep.subr.mxu0 0.0
    %532 = vmatpush1.msra.mxu0 0.0
    %533 = vmatprep.subr.mxu0 0.0
    %534 = vmatpush1.msra.mxu0 0.0
    %535 = vmatprep.subr.mxu0 0.0
    %536 = vmatpush1.msra.mxu0 0.0
    %537 = vmatprep.subr.mxu0 0.0
    %538 = vmatpush1.msra.mxu0 0.0
    %539 = vmatprep.subr.mxu0 0.0
    %540 = vmatpush1.msra.mxu0 0.0
    %541 = vmatprep.subr.mxu0 0.0
    %542 = vmatpush1.msra.mxu0 0.0
    %543 = vmatprep.subr.mxu0 0.0
    %544 = vmatpush1.msra.mxu0 0.0
    %545 = vmatprep.subr.mxu0 0.0
    %546 = vmatpush1.msra.mxu0 0.0
    %547 = vmatprep.subr.mxu0 0.0
    %548 = vmatpush1.msra.mxu0 0.0
    %549 = vmatprep.subr.mxu0 0.0
    %550 = vmatpush1.msra.mxu0 0.0
    %551 = vmatprep.subr.mxu0 0.0
    %552 = vmatpush1.msra.mxu0 0.0
    %553 = vmatprep.subr.mxu0 0.0
    %554 = vmatpush1.msra.mxu0 0.0
    %555 = vmatprep.subr.mxu0 0.0
    %556 = vmatpush1.msra.mxu0 0.0
    %557 = vmatprep.mubr.f32.mxu0 0.0
    %558 = vmatmul.mubr.f32.gmra.mrb[0].mxu0 %v488
    %v559 = vpop.f32.mrb[0].mxu0
    %v560 = vadd.f32 %v485, %v559
    %v561 = vpop.f32.mrb[0].mxu0
    %562 = vmatprep.mubr.f32.mxu0 0.0
    %563 = vmatmul.mubr.f32.gmra.mrb[0].mxu0 %v491
    %v564 = vpop.f32.mrb[0].mxu0
    %v565 = vadd.f32 %v485, %v564
    %v566 = vpop.f32.mrb[0].mxu0
    %567 = vdwg.mxu0
    %vm568 = vcmask 15360
    %v569 = vsel %vm568, %v560, -inf
    %570 = vmax.xlane.f32.xlu0 %v569
    %v571 = vpop.xlane.xlu0 %570
    %v572 = vsel %vm568, %v565, -inf
    %573 = vmax.xlane.f32.xlu0 %v572
    %v574 = vpop.xlane.xlu0 %573
    %v575 = vsub.f32 %v560, %v571
    %v576 = vsub.f32 %v565, %v574
    %v577 = vmul.f32 %v575, 1.442695
    %v578 = vpow.pop %v577
    %v579 = vmul.f32 %v576, 1.442695
    %v580 = vpow.pop %v579
    %v581 = vsel %vm568, %v578, 0.0
    %582 = vadd.xlane.f32.xlu0 %v581
    %v583 = vpop.xlane.xlu0 %582
    %v584 = vsel %vm568, %v580, 0.0
    %585 = vadd.xlane.f32.xlu0 %v584
    %v586 = vpop.xlane.xlu0 %585
    %v587 = vrcp.pop %v583
    %v588 = vmul.f32 %v578, %v587
    %v589 = vrcp.pop %v586
    %v590 = vmul.f32 %v580, %v589
    %591 = vst.msk [vmem:[%s8] sm:$0xff] %vm568, %v588
    %592 = vst.msk [vmem:[%s8 + $0x8] sm:$0xff] %vm568, %v590
    %v593 = vsel %vm568, %v588, 0.0
    %v594 = vsel %vm568, %v590, 0.0
    %v595 = vadd.f32 %v593, %v594
    %v596 = vrot.slane %v595, 4
    %v597 = vadd.f32 %v595, %v596
    %v598 = vrot.slane %v597, 2
    %v599 = vadd.f32 %v597, %v598
    %v600 = vrot.slane %v599, 1
    %v601 = vadd.f32 %v599, %v600
    %vm602 = vcmask 7168
    %v603 = vsel %vm602, %v77, 0.0
    %v604 = vsel %vm602, %v80, 0.0
    %v605 = vadd.f32 %v603, %v604
    %606 = vadd.xlane.f32.xlu0 %v605
    %v607 = vpop.xlane.xlu0 %606
    %v608 = vrot.slane %v607, 4
    %v609 = vadd.f32 %v607, %v608
    %v610 = vrot.slane %v609, 2
    %v611 = vadd.f32 %v609, %v610
    %v612 = vrot.slane %v611, 1
    %v613 = vadd.f32 %v611, %v612
    %s614 = vtos %v613
    %615 = vmatprep.subr.mxu0 0.0
    %616 = vmatpush1.msra.mxu0 %v588
    %617 = vmatprep.subr.mxu0 0.0
    %618 = vmatpush1.msra.mxu0 %v590
    %619 = vmatprep.subr.mxu0 0.0
    %620 = vmatpush1.msra.mxu0 0.0
    %621 = vmatprep.subr.mxu0 0.0
    %622 = vmatpush1.msra.mxu0 0.0
    %623 = vmatprep.subr.mxu0 0.0
    %624 = vmatpush1.msra.mxu0 0.0
    %625 = vmatprep.subr.mxu0 0.0
    %626 = vmatpush1.msra.mxu0 0.0
    %627 = vmatprep.subr.mxu0 0.0
    %628 = vmatpush1.msra.mxu0 0.0
    %629 = vmatprep.subr.mxu0 0.0
    %630 = vmatpush1.msra.mxu0 0.0
    %631 = vmatprep.subr.mxu0 0.0
    %632 = vmatpush1.msra.mxu0 0.0
    %633 = vmatprep.subr.mxu0 0.0
    %634 = vmatpush1.msra.mxu0 0.0
    %635 = vmatprep.subr.mxu0 0.0
    %636 = vmatpush1.msra.mxu0 0.0
    %637 = vmatprep.subr.mxu0 0.0
    %638 = vmatpush1.msra.mxu0 0.0
    %639 = vmatprep.subr.mxu0 0.0
    %640 = vmatpush1.msra.mxu0 0.0
    %641 = vmatprep.subr.mxu0 0.0
    %642 = vmatpush1.msra.mxu0 0.0
    %643 = vmatprep.subr.mxu0 0.0
    %644 = vmatpush1.msra.mxu0 0.0
    %645 = vmatprep.subr.mxu0 0.0
    %646 = vmatpush1.msra.mxu0 0.0
    %647 = vmatprep.subr.mxu0 0.0
    %648 = vmatpush1.msra.mxu0 0.0
    %649 = vmatprep.subr.mxu0 0.0
    %650 = vmatpush1.msra.mxu0 0.0
    %651 = vmatprep.subr.mxu0 0.0
    %652 = vmatpush1.msra.mxu0 0.0
    %653 = vmatprep.subr.mxu0 0.0
    %654 = vmatpush1.msra.mxu0 0.0
    %655 = vmatprep.subr.mxu0 0.0
    %656 = vmatpush1.msra.mxu0 0.0
    %657 = vmatprep.subr.mxu0 0.0
    %658 = vmatpush1.msra.mxu0 0.0
    %659 = vmatprep.subr.mxu0 0.0
    %660 = vmatpush1.msra.mxu0 0.0
    %661 = vmatprep.subr.mxu0 0.0
    %662 = vmatpush1.msra.mxu0 0.0
    %663 = vmatprep.subr.mxu0 0.0
    %664 = vmatpush1.msra.mxu0 0.0
    %665 = vmatprep.subr.mxu0 0.0
    %666 = vmatpush1.msra.mxu0 0.0
    %667 = vmatprep.subr.mxu0 0.0
    %668 = vmatpush1.msra.mxu0 0.0
    %669 = vmatprep.subr.mxu0 0.0
    %670 = vmatpush1.msra.mxu0 0.0
    %671 = vmatprep.subr.mxu0 0.0
    %672 = vmatpush1.msra.mxu0 0.0
    %673 = vmatprep.subr.mxu0 0.0
    %674 = vmatpush1.msra.mxu0 0.0
    %675 = vmatprep.subr.mxu0 0.0
    %676 = vmatpush1.msra.mxu0 0.0
    %677 = vmatprep.subr.mxu0 0.0
    %678 = vmatpush1.msra.mxu0 0.0
    %679 = vmatprep.mubr.f32.mxu0 0.0
    %680 = vmatmul.mubr.f32.gmra.mrb[0].mxu0 %v90
    %v681 = vpop.f32.mrb[0].mxu0
    %v682 = vadd.f32 0.0, %v681
    %v683 = vpop.f32.mrb[0].mxu0
    %684 = vmatprep.mubr.f32.mxu0 0.0
    %685 = vmatmul.mubr.f32.gmra.mrb[0].mxu0 %v93
    %v686 = vpop.f32.mrb[0].mxu0
    %v687 = vadd.f32 0.0, %v686
    %v688 = vpop.f32.mrb[0].mxu0
    %689 = vdwg.mxu0
    %690 = vxpose.xlu0.b32.start [1/16] %v588, 128
    %691 = vxpose.xlu0.b32.cont [2/16] %v590, 128
    %692 = vxpose.xlu0.b32.cont [3/16] 0.0, 128
    %693 = vxpose.xlu0.b32.cont [4/16] 0.0, 128
    %694 = vxpose.xlu0.b32.cont [5/16] 0.0, 128
    %695 = vxpose.xlu0.b32.cont [6/16] 0.0, 128
    %696 = vxpose.xlu0.b32.cont [7/16] 0.0, 128
    %697 = vxpose.xlu0.b32.cont [8/16] 0.0, 128
    %698 = vxpose.xlu0.b32.cont [9/16] 0.0, 128
    %699 = vxpose.xlu0.b32.cont [10/16] 0.0, 128
    %700 = vxpose.xlu0.b32.cont [11/16] 0.0, 128
    %701 = vxpose.xlu0.b32.cont [12/16] 0.0, 128
    %702 = vxpose.xlu0.b32.cont [13/16] 0.0, 128
    %703 = vxpose.xlu0.b32.cont [14/16] 0.0, 128
    %704 = vxpose.xlu0.b32.cont [15/16] 0.0, 128
    %705 = vxpose.xlu0.b32.end [16/16] 0.0, 128
    %v706 = vpop.trf.xlu0
    %v707 = vpop.trf.xlu0
    %v708 = vpop.trf.xlu0
    %v709 = vpop.trf.xlu0
    %v710 = vpop.trf.xlu0
    %v711 = vpop.trf.xlu0
    %v712 = vpop.trf.xlu0
    %v713 = vpop.trf.xlu0
    %v714 = vpop.trf.xlu0
    %v715 = vpop.trf.xlu0
    %v716 = vpop.trf.xlu0
    %v717 = vpop.trf.xlu0
    %v718 = vpop.trf.xlu0
    %v719 = vpop.trf.xlu0
    %v720 = vpop.trf.xlu0
    %v721 = vpop.trf.xlu0
    %v723 = vsel %vm74, %v706, 0
    %725 = vmatprep.subr.mxu0 0.0
    %726 = vmatpush1.msra.mxu0 %v682
    %727 = vmatprep.subr.mxu0 0.0
    %728 = vmatpush1.msra.mxu0 %v687
    %729 = vmatprep.subr.mxu0 0.0
    %730 = vmatpush1.msra.mxu0 0.0
    %731 = vmatprep.subr.mxu0 0.0
    %732 = vmatpush1.msra.mxu0 0.0
    %733 = vmatprep.subr.mxu0 0.0
    %734 = vmatpush1.msra.mxu0 0.0
    %735 = vmatprep.subr.mxu0 0.0
    %736 = vmatpush1.msra.mxu0 0.0
    %737 = vmatprep.subr.mxu0 0.0
    %738 = vmatpush1.msra.mxu0 0.0
    %739 = vmatprep.subr.mxu0 0.0
    %740 = vmatpush1.msra.mxu0 0.0
    %741 = vmatprep.subr.mxu0 0.0
    %742 = vmatpush1.msra.mxu0 0.0
    %743 = vmatprep.subr.mxu0 0.0
    %744 = vmatpush1.msra.mxu0 0.0
    %745 = vmatprep.subr.mxu0 0.0
    %746 = vmatpush1.msra.mxu0 0.0
    %747 = vmatprep.subr.mxu0 0.0
    %748 = vmatpush1.msra.mxu0 0.0
    %749 = vmatprep.subr.mxu0 0.0
    %750 = vmatpush1.msra.mxu0 0.0
    %751 = vmatprep.subr.mxu0 0.0
    %752 = vmatpush1.msra.mxu0 0.0
    %753 = vmatprep.subr.mxu0 0.0
    %754 = vmatpush1.msra.mxu0 0.0
    %755 = vmatprep.subr.mxu0 0.0
    %756 = vmatpush1.msra.mxu0 0.0
    %757 = vmatprep.subr.mxu0 0.0
    %758 = vmatpush1.msra.mxu0 0.0
    %759 = vmatprep.subr.mxu0 0.0
    %760 = vmatpush1.msra.mxu0 0.0
    %761 = vmatprep.subr.mxu0 0.0
    %762 = vmatpush1.msra.mxu0 0.0
    %763 = vmatprep.subr.mxu0 0.0
    %764 = vmatpush1.msra.mxu0 0.0
    %765 = vmatprep.subr.mxu0 0.0
    %766 = vmatpush1.msra.mxu0 0.0
    %767 = vmatprep.subr.mxu0 0.0
    %768 = vmatpush1.msra.mxu0 0.0
    %769 = vmatprep.subr.mxu0 0.0
    %770 = vmatpush1.msra.mxu0 0.0
    %771 = vmatprep.subr.mxu0 0.0
    %772 = vmatpush1.msra.mxu0 0.0
    %773 = vmatprep.subr.mxu0 0.0
    %774 = vmatpush1.msra.mxu0 0.0
    %775 = vmatprep.subr.mxu0 0.0
    %776 = vmatpush1.msra.mxu0 0.0
    %777 = vmatprep.subr.mxu0 0.0
    %778 = vmatpush1.msra.mxu0 0.0
    %779 = vmatprep.subr.mxu0 0.0
    %780 = vmatpush1.msra.mxu0 0.0
    %781 = vmatprep.subr.mxu0 0.0
    %782 = vmatpush1.msra.mxu0 0.0
    %783 = vmatprep.subr.mxu0 0.0
    %784 = vmatpush1.msra.mxu0 0.0
    %785 = vmatprep.subr.mxu0 0.0
    %786 = vmatpush1.msra.mxu0 0.0
    %787 = vmatprep.subr.mxu0 0.0
    %788 = vmatpush1.msra.mxu0 0.0
    %789 = vmatprep.mubr.f32.mxu0 0.0
    %790 = vmatmul.mubr.f32.gmra.mrb[0].mxu0 %v723
    %v791 = vpop.f32.mrb[0].mxu0
    %v792 = vadd.f32 0.0, %v791
    %v793 = vpop.f32.mrb[0].mxu0
    %794 = vdwg.mxu0
    %795 = vmatprep.subr.mxu0 0.0
    %796 = vmatpush1.msra.mxu0 %v77
    %797 = vmatprep.subr.mxu0 0.0
    %798 = vmatpush1.msra.mxu0 %v80
    %799 = vmatprep.subr.mxu0 0.0
    %800 = vmatpush1.msra.mxu0 0.0
    %801 = vmatprep.subr.mxu0 0.0
    %802 = vmatpush1.msra.mxu0 0.0
    %803 = vmatprep.subr.mxu0 0.0
    %804 = vmatpush1.msra.mxu0 0.0
    %805 = vmatprep.subr.mxu0 0.0
    %806 = vmatpush1.msra.mxu0 0.0
    %807 = vmatprep.subr.mxu0 0.0
    %808 = vmatpush1.msra.mxu0 0.0
    %809 = vmatprep.subr.mxu0 0.0
    %810 = vmatpush1.msra.mxu0 0.0
    %811 = vmatprep.subr.mxu0 0.0
    %812 = vmatpush1.msra.mxu0 0.0
    %813 = vmatprep.subr.mxu0 0.0
    %814 = vmatpush1.msra.mxu0 0.0
    %815 = vmatprep.subr.mxu0 0.0
    %816 = vmatpush1.msra.mxu0 0.0
    %817 = vmatprep.subr.mxu0 0.0
    %818 = vmatpush1.msra.mxu0 0.0
    %819 = vmatprep.subr.mxu0 0.0
    %820 = vmatpush1.msra.mxu0 0.0
    %821 = vmatprep.subr.mxu0 0.0
    %822 = vmatpush1.msra.mxu0 0.0
    %823 = vmatprep.subr.mxu0 0.0
    %824 = vmatpush1.msra.mxu0 0.0
    %825 = vmatprep.subr.mxu0 0.0
    %826 = vmatpush1.msra.mxu0 0.0
    %827 = vmatprep.subr.mxu0 0.0
    %828 = vmatpush1.msra.mxu0 0.0
    %829 = vmatprep.subr.mxu0 0.0
    %830 = vmatpush1.msra.mxu0 0.0
    %831 = vmatprep.subr.mxu0 0.0
    %832 = vmatpush1.msra.mxu0 0.0
    %833 = vmatprep.subr.mxu0 0.0
    %834 = vmatpush1.msra.mxu0 0.0
    %835 = vmatprep.subr.mxu0 0.0
    %836 = vmatpush1.msra.mxu0 0.0
    %837 = vmatprep.subr.mxu0 0.0
    %838 = vmatpush1.msra.mxu0 0.0
    %839 = vmatprep.subr.mxu0 0.0
    %840 = vmatpush1.msra.mxu0 0.0
    %841 = vmatprep.subr.mxu0 0.0
    %842 = vmatpush1.msra.mxu0 0.0
    %843 = vmatprep.subr.mxu0 0.0
    %844 = vmatpush1.msra.mxu0 0.0
    %845 = vmatprep.subr.mxu0 0.0
    %846 = vmatpush1.msra.mxu0 0.0
    %847 = vmatprep.subr.mxu0 0.0
    %848 = vmatpush1.msra.mxu0 0.0
    %849 = vmatprep.subr.mxu0 0.0
    %850 = vmatpush1.msra.mxu0 0.0
    %851 = vmatprep.subr.mxu0 0.0
    %852 = vmatpush1.msra.mxu0 0.0
    %853 = vmatprep.subr.mxu0 0.0
    %854 = vmatpush1.msra.mxu0 0.0
    %855 = vmatprep.subr.mxu0 0.0
    %856 = vmatpush1.msra.mxu0 0.0
    %857 = vmatprep.subr.mxu0 0.0
    %858 = vmatpush1.msra.mxu0 0.0
    %859 = vmatprep.mubr.f32.mxu0 0.0
    %860 = vmatmul.mubr.f32.gmra.mrb[0].mxu0 %v723
    %v861 = vpop.f32.mrb[0].mxu0
    %v862 = vadd.f32 0.0, %v861
    %v863 = vpop.f32.mrb[0].mxu0
    %864 = vdwg.mxu0
    %865 = vxpose.xlu0.b32.start [1/16] %v77, 128
    %866 = vxpose.xlu0.b32.cont [2/16] %v80, 128
    %867 = vxpose.xlu0.b32.cont [3/16] 0.0, 128
    %868 = vxpose.xlu0.b32.cont [4/16] 0.0, 128
    %869 = vxpose.xlu0.b32.cont [5/16] 0.0, 128
    %870 = vxpose.xlu0.b32.cont [6/16] 0.0, 128
    %871 = vxpose.xlu0.b32.cont [7/16] 0.0, 128
    %872 = vxpose.xlu0.b32.cont [8/16] 0.0, 128
    %873 = vxpose.xlu0.b32.cont [9/16] 0.0, 128
    %874 = vxpose.xlu0.b32.cont [10/16] 0.0, 128
    %875 = vxpose.xlu0.b32.cont [11/16] 0.0, 128
    %876 = vxpose.xlu0.b32.cont [12/16] 0.0, 128
    %877 = vxpose.xlu0.b32.cont [13/16] 0.0, 128
    %878 = vxpose.xlu0.b32.cont [14/16] 0.0, 128
    %879 = vxpose.xlu0.b32.cont [15/16] 0.0, 128
    %880 = vxpose.xlu0.b32.end [16/16] 0.0, 128
    %v881 = vpop.trf.xlu0
    %v882 = vpop.trf.xlu0
    %v883 = vpop.trf.xlu0
    %v884 = vpop.trf.xlu0
    %v885 = vpop.trf.xlu0
    %v886 = vpop.trf.xlu0
    %v887 = vpop.trf.xlu0
    %v888 = vpop.trf.xlu0
    %v889 = vpop.trf.xlu0
    %v890 = vpop.trf.xlu0
    %v891 = vpop.trf.xlu0
    %v892 = vpop.trf.xlu0
    %v893 = vpop.trf.xlu0
    %v894 = vpop.trf.xlu0
    %v895 = vpop.trf.xlu0
    %v896 = vpop.trf.xlu0
    %v898 = vsel %vm74, %v881, 0
    %900 = vmatprep.subr.mxu0 0.0
    %901 = vmatpush1.msra.mxu0 %v588
    %902 = vmatprep.subr.mxu0 0.0
    %903 = vmatpush1.msra.mxu0 %v590
    %904 = vmatprep.subr.mxu0 0.0
    %905 = vmatpush1.msra.mxu0 0.0
    %906 = vmatprep.subr.mxu0 0.0
    %907 = vmatpush1.msra.mxu0 0.0
    %908 = vmatprep.subr.mxu0 0.0
    %909 = vmatpush1.msra.mxu0 0.0
    %910 = vmatprep.subr.mxu0 0.0
    %911 = vmatpush1.msra.mxu0 0.0
    %912 = vmatprep.subr.mxu0 0.0
    %913 = vmatpush1.msra.mxu0 0.0
    %914 = vmatprep.subr.mxu0 0.0
    %915 = vmatpush1.msra.mxu0 0.0
    %916 = vmatprep.subr.mxu0 0.0
    %917 = vmatpush1.msra.mxu0 0.0
    %918 = vmatprep.subr.mxu0 0.0
    %919 = vmatpush1.msra.mxu0 0.0
    %920 = vmatprep.subr.mxu0 0.0
    %921 = vmatpush1.msra.mxu0 0.0
    %922 = vmatprep.subr.mxu0 0.0
    %923 = vmatpush1.msra.mxu0 0.0
    %924 = vmatprep.subr.mxu0 0.0
    %925 = vmatpush1.msra.mxu0 0.0
    %926 = vmatprep.subr.mxu0 0.0
    %927 = vmatpush1.msra.mxu0 0.0
    %928 = vmatprep.subr.mxu0 0.0
    %929 = vmatpush1.msra.mxu0 0.0
    %930 = vmatprep.subr.mxu0 0.0
    %931 = vmatpush1.msra.mxu0 0.0
    %932 = vmatprep.subr.mxu0 0.0
    %933 = vmatpush1.msra.mxu0 0.0
    %934 = vmatprep.subr.mxu0 0.0
    %935 = vmatpush1.msra.mxu0 0.0
    %936 = vmatprep.subr.mxu0 0.0
    %937 = vmatpush1.msra.mxu0 0.0
    %938 = vmatprep.subr.mxu0 0.0
    %939 = vmatpush1.msra.mxu0 0.0
    %940 = vmatprep.subr.mxu0 0.0
    %941 = vmatpush1.msra.mxu0 0.0
    %942 = vmatprep.subr.mxu0 0.0
    %943 = vmatpush1.msra.mxu0 0.0
    %944 = vmatprep.subr.mxu0 0.0
    %945 = vmatpush1.msra.mxu0 0.0
    %946 = vmatprep.subr.mxu0 0.0
    %947 = vmatpush1.msra.mxu0 0.0
    %948 = vmatprep.subr.mxu0 0.0
    %949 = vmatpush1.msra.mxu0 0.0
    %950 = vmatprep.subr.mxu0 0.0
    %951 = vmatpush1.msra.mxu0 0.0
    %952 = vmatprep.subr.mxu0 0.0
    %953 = vmatpush1.msra.mxu0 0.0
    %954 = vmatprep.subr.mxu0 0.0
    %955 = vmatpush1.msra.mxu0 0.0
    %956 = vmatprep.subr.mxu0 0.0
    %957 = vmatpush1.msra.mxu0 0.0
    %958 = vmatprep.subr.mxu0 0.0
    %959 = vmatpush1.msra.mxu0 0.0
    %960 = vmatprep.subr.mxu0 0.0
    %961 = vmatpush1.msra.mxu0 0.0
    %962 = vmatprep.subr.mxu0 0.0
    %963 = vmatpush1.msra.mxu0 0.0
    %964 = vmatprep.mubr.f32.mxu0 0.0
    %965 = vmatmul.mubr.f32.gmra.mrb[0].mxu0 %v898
    %v966 = vpop.f32.mrb[0].mxu0
    %v967 = vadd.f32 0.0, %v966
    %v968 = vpop.f32.mrb[0].mxu0
    %969 = vdwg.mxu0
    %971 = vset.pattern.permute.xlu0 0
    %972 = vperm.xlu0 %971, %v862
    %v973 = vpop.permute.xlu0 %972
    %v975 = vlaneseq
    %v976 = vshrl.u32 %v975, 7
    %v977 = vsub.s32 0, %v976
    %v978 = vrot.slane %v967, %v977
    %v979 = vmul.f32 %v973, %v978
    %980 = vst [vmem:[%s9] sm:$0xff] 0.0
    %vm981 = vcmask 9216
    %982 = vst.msk [vmem:[%s9] sm:$0x3] %vm981, %v792
    %983 = vst.msk [vmem:[%s9 + $0x2] sm:$0x3] %vm981, %v979
    %vm984 = vcmask 8192
    %985 = vst.msk [vmem:[%s9 + $0x4] sm:$0x1] %vm984, %v601
    %v986 = vstv %s614
    %987 = vst.msk [vmem:[%s9 + $0x5] sm:$0x1] %vm984, %v986
    %s988 = scalar_lea.vmem %s0, 16
    %v989 = vld [vmem:[%s988] sm:$0xff]
    %v990 = vld [vmem:[%s988 + $0x8] sm:$0xff]
    %s991 = scalar_lea.vmem %s1, 16
    %v992 = vld [vmem:[%s991] sm:$0xff]
    %v993 = vld [vmem:[%s991 + $0x8] sm:$0xff]
    %v994 = vsel %vm74, %v989, 0.0
    %995 = vadd.xlane.f32.xlu0 %v994
    %v996 = vpop.xlane.xlu0 %995
    %v997 = vsel %vm74, %v990, 0.0
    %998 = vadd.xlane.f32.xlu0 %v997
    %v999 = vpop.xlane.xlu0 %998
    %vm1000 = vcmp.gt.f32.partialorder %v996, 0.0
    %vm1001 = vcmp.gt.f32.partialorder %v999, 0.0
    %v1002 = vrsqrt.pop %v996
    %v1003 = vrsqrt.pop %v999
    %v1004 = vsel %vm1000, %v1002, 0.0
    %v1005 = vsel %vm1001, %v1003, 0.0
    %v1006 = vmul.f32 %v1004, %v992
    %v1007 = vmul.f32 %v1005, %v993
    %v1009 = vsel %vm74, %v989, 0
    %v1012 = vsel %vm74, %v990, 0
    %1014 = vmatprep.subr.mxu0 0.0
    %1015 = vmatpush1.msra.mxu0 %v1006
    %1016 = vmatprep.subr.mxu0 0.0
    %1017 = vmatpush1.msra.mxu0 %v1007
    %1018 = vmatprep.subr.mxu0 0.0
    %1019 = vmatpush1.msra.mxu0 0.0
    %1020 = vmatprep.subr.mxu0 0.0
    %1021 = vmatpush1.msra.mxu0 0.0
    %1022 = vmatprep.subr.mxu0 0.0
    %1023 = vmatpush1.msra.mxu0 0.0
    %1024 = vmatprep.subr.mxu0 0.0
    %1025 = vmatpush1.msra.mxu0 0.0
    %1026 = vmatprep.subr.mxu0 0.0
    %1027 = vmatpush1.msra.mxu0 0.0
    %1028 = vmatprep.subr.mxu0 0.0
    %1029 = vmatpush1.msra.mxu0 0.0
    %1030 = vmatprep.subr.mxu0 0.0
    %1031 = vmatpush1.msra.mxu0 0.0
    %1032 = vmatprep.subr.mxu0 0.0
    %1033 = vmatpush1.msra.mxu0 0.0
    %1034 = vmatprep.subr.mxu0 0.0
    %1035 = vmatpush1.msra.mxu0 0.0
    %1036 = vmatprep.subr.mxu0 0.0
    %1037 = vmatpush1.msra.mxu0 0.0
    %1038 = vmatprep.subr.mxu0 0.0
    %1039 = vmatpush1.msra.mxu0 0.0
    %1040 = vmatprep.subr.mxu0 0.0
    %1041 = vmatpush1.msra.mxu0 0.0
    %1042 = vmatprep.subr.mxu0 0.0
    %1043 = vmatpush1.msra.mxu0 0.0
    %1044 = vmatprep.subr.mxu0 0.0
    %1045 = vmatpush1.msra.mxu0 0.0
    %1046 = vmatprep.subr.mxu0 0.0
    %1047 = vmatpush1.msra.mxu0 0.0
    %1048 = vmatprep.subr.mxu0 0.0
    %1049 = vmatpush1.msra.mxu0 0.0
    %1050 = vmatprep.subr.mxu0 0.0
    %1051 = vmatpush1.msra.mxu0 0.0
    %1052 = vmatprep.subr.mxu0 0.0
    %1053 = vmatpush1.msra.mxu0 0.0
    %1054 = vmatprep.subr.mxu0 0.0
    %1055 = vmatpush1.msra.mxu0 0.0
    %1056 = vmatprep.subr.mxu0 0.0
    %1057 = vmatpush1.msra.mxu0 0.0
    %1058 = vmatprep.subr.mxu0 0.0
    %1059 = vmatpush1.msra.mxu0 0.0
    %1060 = vmatprep.subr.mxu0 0.0
    %1061 = vmatpush1.msra.mxu0 0.0
    %1062 = vmatprep.subr.mxu0 0.0
    %1063 = vmatpush1.msra.mxu0 0.0
    %1064 = vmatprep.subr.mxu0 0.0
    %1065 = vmatpush1.msra.mxu0 0.0
    %1066 = vmatprep.subr.mxu0 0.0
    %1067 = vmatpush1.msra.mxu0 0.0
    %1068 = vmatprep.subr.mxu0 0.0
    %1069 = vmatpush1.msra.mxu0 0.0
    %1070 = vmatprep.subr.mxu0 0.0
    %1071 = vmatpush1.msra.mxu0 0.0
    %1072 = vmatprep.subr.mxu0 0.0
    %1073 = vmatpush1.msra.mxu0 0.0
    %1074 = vmatprep.subr.mxu0 0.0
    %1075 = vmatpush1.msra.mxu0 0.0
    %1076 = vmatprep.subr.mxu0 0.0
    %1077 = vmatpush1.msra.mxu0 0.0
    %1078 = vmatprep.mubr.f32.mxu0 0.0
    %1079 = vmatmul.mubr.f32.gmra.mrb[0].mxu0 %v1009
    %v1080 = vpop.f32.mrb[0].mxu0
    %v1081 = vadd.f32 0.0, %v1080
    %v1082 = vpop.f32.mrb[0].mxu0
    %1083 = vmatprep.mubr.f32.mxu0 0.0
    %1084 = vmatmul.mubr.f32.gmra.mrb[0].mxu0 %v1012
    %v1085 = vpop.f32.mrb[0].mxu0
    %v1086 = vadd.f32 0.0, %v1085
    %v1087 = vpop.f32.mrb[0].mxu0
    %1088 = vdwg.mxu0
    %v1089 = vmul.f32 %v1004, %v1081
    %v1090 = vmul.f32 %v1005, %v1086
    %1093 = vrot.lane.b32.xlu0 %v992, 8
    %v1094 = vpop.permute.xlu0 %1093
    %1095 = vrot.lane.b32.xlu0 %v993, 8
    %v1096 = vpop.permute.xlu0 %1095
    %v1099 = vsel %vm180, %v1089, %v1094
    %v1100 = vsel %vm180, %v1090, %v1096
    %v1102 = vsel %vm74, %v1099, 0
    %v1105 = vsel %vm74, %v1100, 0
    %1107 = vmatprep.subr.mxu0 0.0
    %1108 = vmatpush1.msra.mxu0 %v59
    %1109 = vmatprep.subr.mxu0 0.0
    %1110 = vmatpush1.msra.mxu0 %v60
    %1111 = vmatprep.subr.mxu0 0.0
    %1112 = vmatpush1.msra.mxu0 0.0
    %1113 = vmatprep.subr.mxu0 0.0
    %1114 = vmatpush1.msra.mxu0 0.0
    %1115 = vmatprep.subr.mxu0 0.0
    %1116 = vmatpush1.msra.mxu0 0.0
    %1117 = vmatprep.subr.mxu0 0.0
    %1118 = vmatpush1.msra.mxu0 0.0
    %1119 = vmatprep.subr.mxu0 0.0
    %1120 = vmatpush1.msra.mxu0 0.0
    %1121 = vmatprep.subr.mxu0 0.0
    %1122 = vmatpush1.msra.mxu0 0.0
    %1123 = vmatprep.subr.mxu0 0.0
    %1124 = vmatpush1.msra.mxu0 0.0
    %1125 = vmatprep.subr.mxu0 0.0
    %1126 = vmatpush1.msra.mxu0 0.0
    %1127 = vmatprep.subr.mxu0 0.0
    %1128 = vmatpush1.msra.mxu0 0.0
    %1129 = vmatprep.subr.mxu0 0.0
    %1130 = vmatpush1.msra.mxu0 0.0
    %1131 = vmatprep.subr.mxu0 0.0
    %1132 = vmatpush1.msra.mxu0 0.0
    %1133 = vmatprep.subr.mxu0 0.0
    %1134 = vmatpush1.msra.mxu0 0.0
    %1135 = vmatprep.subr.mxu0 0.0
    %1136 = vmatpush1.msra.mxu0 0.0
    %1137 = vmatprep.subr.mxu0 0.0
    %1138 = vmatpush1.msra.mxu0 0.0
    %1139 = vmatprep.subr.mxu0 0.0
    %1140 = vmatpush1.msra.mxu0 0.0
    %1141 = vmatprep.subr.mxu0 0.0
    %1142 = vmatpush1.msra.mxu0 0.0
    %1143 = vmatprep.subr.mxu0 0.0
    %1144 = vmatpush1.msra.mxu0 0.0
    %1145 = vmatprep.subr.mxu0 0.0
    %1146 = vmatpush1.msra.mxu0 0.0
    %1147 = vmatprep.subr.mxu0 0.0
    %1148 = vmatpush1.msra.mxu0 0.0
    %1149 = vmatprep.subr.mxu0 0.0
    %1150 = vmatpush1.msra.mxu0 0.0
    %1151 = vmatprep.subr.mxu0 0.0
    %1152 = vmatpush1.msra.mxu0 0.0
    %1153 = vmatprep.subr.mxu0 0.0
    %1154 = vmatpush1.msra.mxu0 0.0
    %1155 = vmatprep.subr.mxu0 0.0
    %1156 = vmatpush1.msra.mxu0 0.0
    %1157 = vmatprep.subr.mxu0 0.0
    %1158 = vmatpush1.msra.mxu0 0.0
    %1159 = vmatprep.subr.mxu0 0.0
    %1160 = vmatpush1.msra.mxu0 0.0
    %1161 = vmatprep.subr.mxu0 0.0
    %1162 = vmatpush1.msra.mxu0 0.0
    %1163 = vmatprep.subr.mxu0 0.0
    %1164 = vmatpush1.msra.mxu0 0.0
    %1165 = vmatprep.subr.mxu0 0.0
    %1166 = vmatpush1.msra.mxu0 0.0
    %1167 = vmatprep.subr.mxu0 0.0
    %1168 = vmatpush1.msra.mxu0 0.0
    %1169 = vmatprep.subr.mxu0 0.0
    %1170 = vmatpush1.msra.mxu0 0.0
    %1171 = vmatprep.mubr.f32.mxu0 0.0
    %1172 = vmatmul.mubr.f32.gmra.mrb[0].mxu0 %v1102
    %v1173 = vpop.f32.mrb[0].mxu0
    %v1174 = vadd.f32 %v187, %v1173
    %v1175 = vpop.f32.mrb[0].mxu0
    %1176 = vmatprep.mubr.f32.mxu0 0.0
    %1177 = vmatmul.mubr.f32.gmra.mrb[0].mxu0 %v1105
    %v1178 = vpop.f32.mrb[0].mxu0
    %v1179 = vadd.f32 %v187, %v1178
    %v1180 = vpop.f32.mrb[0].mxu0
    %1181 = vdwg.mxu0
    %vm1182 = vcmp.gt.f32.partialorder %v1174, 0.0
    %vm1183 = vcmp.gt.f32.partialorder %v1179, 0.0
    %v1184 = vmin.f32 %v1174, 0.0
    %v1185 = vmin.f32 %v1179, 0.0
    %v1186 = vmul.f32 %v1184, 1.442695
    %v1187 = vpow.pop %v1186
    %v1188 = vmul.f32 %v1185, 1.442695
    %v1189 = vpow.pop %v1188
    %v1190 = vsub.f32 %v1187, 1.0
    %v1191 = vsub.f32 %v1189, 1.0
    %v1192 = vmul.f32 %v1190, 1.6732632
    %v1193 = vmul.f32 %v1191, 1.6732632
    %v1194 = vsel %vm1182, %v1174, %v1192
    %v1195 = vsel %vm1183, %v1179, %v1193
    %v1196 = vmul.f32 %v1194, 1.050701
    %v1197 = vmul.f32 %v1195, 1.050701
    %v1199 = vsel %vm286, %v1196, 0
    %v1202 = vsel %vm286, %v1197, 0
    %1204 = vmatprep.subr.mxu0 0.0
    %1205 = vmatpush1.msra.mxu0 %v62
    %1206 = vmatprep.subr.mxu0 0.0
    %1207 = vmatpush1.msra.mxu0 %v63
    %1208 = vmatprep.subr.mxu0 0.0
    %1209 = vmatpush1.msra.mxu0 %v64
    %1210 = vmatprep.subr.mxu0 0.0
    %1211 = vmatpush1.msra.mxu0 %v65
    %1212 = vmatprep.subr.mxu0 0.0
    %1213 = vmatpush1.msra.mxu0 0.0
    %1214 = vmatprep.subr.mxu0 0.0
    %1215 = vmatpush1.msra.mxu0 0.0
    %1216 = vmatprep.subr.mxu0 0.0
    %1217 = vmatpush1.msra.mxu0 0.0
    %1218 = vmatprep.subr.mxu0 0.0
    %1219 = vmatpush1.msra.mxu0 0.0
    %1220 = vmatprep.subr.mxu0 0.0
    %1221 = vmatpush1.msra.mxu0 0.0
    %1222 = vmatprep.subr.mxu0 0.0
    %1223 = vmatpush1.msra.mxu0 0.0
    %1224 = vmatprep.subr.mxu0 0.0
    %1225 = vmatpush1.msra.mxu0 0.0
    %1226 = vmatprep.subr.mxu0 0.0
    %1227 = vmatpush1.msra.mxu0 0.0
    %1228 = vmatprep.subr.mxu0 0.0
    %1229 = vmatpush1.msra.mxu0 0.0
    %1230 = vmatprep.subr.mxu0 0.0
    %1231 = vmatpush1.msra.mxu0 0.0
    %1232 = vmatprep.subr.mxu0 0.0
    %1233 = vmatpush1.msra.mxu0 0.0
    %1234 = vmatprep.subr.mxu0 0.0
    %1235 = vmatpush1.msra.mxu0 0.0
    %1236 = vmatprep.subr.mxu0 0.0
    %1237 = vmatpush1.msra.mxu0 0.0
    %1238 = vmatprep.subr.mxu0 0.0
    %1239 = vmatpush1.msra.mxu0 0.0
    %1240 = vmatprep.subr.mxu0 0.0
    %1241 = vmatpush1.msra.mxu0 0.0
    %1242 = vmatprep.subr.mxu0 0.0
    %1243 = vmatpush1.msra.mxu0 0.0
    %1244 = vmatprep.subr.mxu0 0.0
    %1245 = vmatpush1.msra.mxu0 0.0
    %1246 = vmatprep.subr.mxu0 0.0
    %1247 = vmatpush1.msra.mxu0 0.0
    %1248 = vmatprep.subr.mxu0 0.0
    %1249 = vmatpush1.msra.mxu0 0.0
    %1250 = vmatprep.subr.mxu0 0.0
    %1251 = vmatpush1.msra.mxu0 0.0
    %1252 = vmatprep.subr.mxu0 0.0
    %1253 = vmatpush1.msra.mxu0 0.0
    %1254 = vmatprep.subr.mxu0 0.0
    %1255 = vmatpush1.msra.mxu0 0.0
    %1256 = vmatprep.subr.mxu0 0.0
    %1257 = vmatpush1.msra.mxu0 0.0
    %1258 = vmatprep.subr.mxu0 0.0
    %1259 = vmatpush1.msra.mxu0 0.0
    %1260 = vmatprep.subr.mxu0 0.0
    %1261 = vmatpush1.msra.mxu0 0.0
    %1262 = vmatprep.subr.mxu0 0.0
    %1263 = vmatpush1.msra.mxu0 0.0
    %1264 = vmatprep.subr.mxu0 0.0
    %1265 = vmatpush1.msra.mxu0 0.0
    %1266 = vmatprep.subr.mxu0 0.0
    %1267 = vmatpush1.msra.mxu0 0.0
    %1268 = vmatprep.mubr.f32.mxu0 0.0
    %1269 = vmatmul.mubr.f32.gmra.mrb[0].mxu0 %v1199
    %v1270 = vpop.f32.mrb[0].mxu0
    %v1271 = vadd.f32 0.0, %v1270
    %v1272 = vpop.f32.mrb[0].mxu0
    %1273 = vmatprep.mubr.f32.mxu0 0.0
    %1274 = vmatmul.mubr.f32.gmra.mrb[0].mxu0 %v1202
    %v1275 = vpop.f32.mrb[0].mxu0
    %v1276 = vadd.f32 0.0, %v1275
    %v1277 = vpop.f32.mrb[0].mxu0
    %1278 = vdwg.mxu0
    %v1279 = vmul.f32 %v1004, %v1271
    %v1280 = vmul.f32 %v1005, %v1276
    %1281 = vmatprep.subr.mxu0 0.0
    %1282 = vmatpush1.msra.mxu0 %v1279
    %1283 = vmatprep.subr.mxu0 0.0
    %1284 = vmatpush1.msra.mxu0 %v1280
    %1285 = vmatprep.subr.mxu0 0.0
    %1286 = vmatpush1.msra.mxu0 0.0
    %1287 = vmatprep.subr.mxu0 0.0
    %1288 = vmatpush1.msra.mxu0 0.0
    %1289 = vmatprep.subr.mxu0 0.0
    %1290 = vmatpush1.msra.mxu0 0.0
    %1291 = vmatprep.subr.mxu0 0.0
    %1292 = vmatpush1.msra.mxu0 0.0
    %1293 = vmatprep.subr.mxu0 0.0
    %1294 = vmatpush1.msra.mxu0 0.0
    %1295 = vmatprep.subr.mxu0 0.0
    %1296 = vmatpush1.msra.mxu0 0.0
    %1297 = vmatprep.subr.mxu0 0.0
    %1298 = vmatpush1.msra.mxu0 0.0
    %1299 = vmatprep.subr.mxu0 0.0
    %1300 = vmatpush1.msra.mxu0 0.0
    %1301 = vmatprep.subr.mxu0 0.0
    %1302 = vmatpush1.msra.mxu0 0.0
    %1303 = vmatprep.subr.mxu0 0.0
    %1304 = vmatpush1.msra.mxu0 0.0
    %1305 = vmatprep.subr.mxu0 0.0
    %1306 = vmatpush1.msra.mxu0 0.0
    %1307 = vmatprep.subr.mxu0 0.0
    %1308 = vmatpush1.msra.mxu0 0.0
    %1309 = vmatprep.subr.mxu0 0.0
    %1310 = vmatpush1.msra.mxu0 0.0
    %1311 = vmatprep.subr.mxu0 0.0
    %1312 = vmatpush1.msra.mxu0 0.0
    %1313 = vmatprep.subr.mxu0 0.0
    %1314 = vmatpush1.msra.mxu0 0.0
    %1315 = vmatprep.subr.mxu0 0.0
    %1316 = vmatpush1.msra.mxu0 0.0
    %1317 = vmatprep.subr.mxu0 0.0
    %1318 = vmatpush1.msra.mxu0 0.0
    %1319 = vmatprep.subr.mxu0 0.0
    %1320 = vmatpush1.msra.mxu0 0.0
    %1321 = vmatprep.subr.mxu0 0.0
    %1322 = vmatpush1.msra.mxu0 0.0
    %1323 = vmatprep.subr.mxu0 0.0
    %1324 = vmatpush1.msra.mxu0 0.0
    %1325 = vmatprep.subr.mxu0 0.0
    %1326 = vmatpush1.msra.mxu0 0.0
    %1327 = vmatprep.subr.mxu0 0.0
    %1328 = vmatpush1.msra.mxu0 0.0
    %1329 = vmatprep.subr.mxu0 0.0
    %1330 = vmatpush1.msra.mxu0 0.0
    %1331 = vmatprep.subr.mxu0 0.0
    %1332 = vmatpush1.msra.mxu0 0.0
    %1333 = vmatprep.subr.mxu0 0.0
    %1334 = vmatpush1.msra.mxu0 0.0
    %1335 = vmatprep.subr.mxu0 0.0
    %1336 = vmatpush1.msra.mxu0 0.0
    %1337 = vmatprep.subr.mxu0 0.0
    %1338 = vmatpush1.msra.mxu0 0.0
    %1339 = vmatprep.subr.mxu0 0.0
    %1340 = vmatpush1.msra.mxu0 0.0
    %1341 = vmatprep.subr.mxu0 0.0
    %1342 = vmatpush1.msra.mxu0 0.0
    %1343 = vmatprep.subr.mxu0 0.0
    %1344 = vmatpush1.msra.mxu0 0.0
    %1345 = vmatprep.mubr.f32.mxu0 0.0
    %1346 = vmatmul.mubr.f32.gmra.mrb[0].mxu0 %v1009
    %v1347 = vpop.f32.mrb[0].mxu0
    %v1348 = vadd.f32 0.0, %v1347
    %v1349 = vpop.f32.mrb[0].mxu0
    %1350 = vmatprep.mubr.f32.mxu0 0.0
    %1351 = vmatmul.mubr.f32.gmra.mrb[0].mxu0 %v1012
    %v1352 = vpop.f32.mrb[0].mxu0
    %v1353 = vadd.f32 0.0, %v1352
    %v1354 = vpop.f32.mrb[0].mxu0
    %1355 = vdwg.mxu0
    %v1356 = vmul.f32 %v1004, %v1348
    %v1357 = vmul.f32 %v1005, %v1353
    %1360 = vrot.lane.b32.xlu0 %v1271, 112
    %v1361 = vpop.permute.xlu0 %1360
    %1362 = vrot.lane.b32.xlu0 %v1276, 112
    %v1363 = vpop.permute.xlu0 %1362
    %v1366 = vadd.f32 %v1356, %v1361
    %v1367 = vadd.f32 %v1357, %v1363
    %v1368 = vadd.f32 %v1366, %v461
    %v1369 = vadd.f32 %v1367, %v461
    %vm1370 = vcmp.gt.f32.partialorder %v1368, 0.0
    %vm1371 = vcmp.gt.f32.partialorder %v1369, 0.0
    %v1372 = vmin.f32 %v1368, 0.0
    %v1373 = vmin.f32 %v1369, 0.0
    %v1374 = vmul.f32 %v1372, 1.442695
    %v1375 = vpow.pop %v1374
    %v1376 = vmul.f32 %v1373, 1.442695
    %v1377 = vpow.pop %v1376
    %v1378 = vsub.f32 %v1375, 1.0
    %v1379 = vsub.f32 %v1377, 1.0
    %v1380 = vmul.f32 %v1378, 1.6732632
    %v1381 = vmul.f32 %v1379, 1.6732632
    %v1382 = vsel %vm1370, %v1368, %v1380
    %v1383 = vsel %vm1371, %v1369, %v1381
    %v1384 = vmul.f32 %v1382, 1.050701
    %v1385 = vmul.f32 %v1383, 1.050701
    %v1387 = vsel %vm74, %v1384, 0
    %v1390 = vsel %vm74, %v1385, 0
    %1392 = vmatprep.subr.mxu0 0.0
    %1393 = vmatpush1.msra.mxu0 %v67
    %1394 = vmatprep.subr.mxu0 0.0
    %1395 = vmatpush1.msra.mxu0 %v68
    %1396 = vmatprep.subr.mxu0 0.0
    %1397 = vmatpush1.msra.mxu0 0.0
    %1398 = vmatprep.subr.mxu0 0.0
    %1399 = vmatpush1.msra.mxu0 0.0
    %1400 = vmatprep.subr.mxu0 0.0
    %1401 = vmatpush1.msra.mxu0 0.0
    %1402 = vmatprep.subr.mxu0 0.0
    %1403 = vmatpush1.msra.mxu0 0.0
    %1404 = vmatprep.subr.mxu0 0.0
    %1405 = vmatpush1.msra.mxu0 0.0
    %1406 = vmatprep.subr.mxu0 0.0
    %1407 = vmatpush1.msra.mxu0 0.0
    %1408 = vmatprep.subr.mxu0 0.0
    %1409 = vmatpush1.msra.mxu0 0.0
    %1410 = vmatprep.subr.mxu0 0.0
    %1411 = vmatpush1.msra.mxu0 0.0
    %1412 = vmatprep.subr.mxu0 0.0
    %1413 = vmatpush1.msra.mxu0 0.0
    %1414 = vmatprep.subr.mxu0 0.0
    %1415 = vmatpush1.msra.mxu0 0.0
    %1416 = vmatprep.subr.mxu0 0.0
    %1417 = vmatpush1.msra.mxu0 0.0
    %1418 = vmatprep.subr.mxu0 0.0
    %1419 = vmatpush1.msra.mxu0 0.0
    %1420 = vmatprep.subr.mxu0 0.0
    %1421 = vmatpush1.msra.mxu0 0.0
    %1422 = vmatprep.subr.mxu0 0.0
    %1423 = vmatpush1.msra.mxu0 0.0
    %1424 = vmatprep.subr.mxu0 0.0
    %1425 = vmatpush1.msra.mxu0 0.0
    %1426 = vmatprep.subr.mxu0 0.0
    %1427 = vmatpush1.msra.mxu0 0.0
    %1428 = vmatprep.subr.mxu0 0.0
    %1429 = vmatpush1.msra.mxu0 0.0
    %1430 = vmatprep.subr.mxu0 0.0
    %1431 = vmatpush1.msra.mxu0 0.0
    %1432 = vmatprep.subr.mxu0 0.0
    %1433 = vmatpush1.msra.mxu0 0.0
    %1434 = vmatprep.subr.mxu0 0.0
    %1435 = vmatpush1.msra.mxu0 0.0
    %1436 = vmatprep.subr.mxu0 0.0
    %1437 = vmatpush1.msra.mxu0 0.0
    %1438 = vmatprep.subr.mxu0 0.0
    %1439 = vmatpush1.msra.mxu0 0.0
    %1440 = vmatprep.subr.mxu0 0.0
    %1441 = vmatpush1.msra.mxu0 0.0
    %1442 = vmatprep.subr.mxu0 0.0
    %1443 = vmatpush1.msra.mxu0 0.0
    %1444 = vmatprep.subr.mxu0 0.0
    %1445 = vmatpush1.msra.mxu0 0.0
    %1446 = vmatprep.subr.mxu0 0.0
    %1447 = vmatpush1.msra.mxu0 0.0
    %1448 = vmatprep.subr.mxu0 0.0
    %1449 = vmatpush1.msra.mxu0 0.0
    %1450 = vmatprep.subr.mxu0 0.0
    %1451 = vmatpush1.msra.mxu0 0.0
    %1452 = vmatprep.subr.mxu0 0.0
    %1453 = vmatpush1.msra.mxu0 0.0
    %1454 = vmatprep.subr.mxu0 0.0
    %1455 = vmatpush1.msra.mxu0 0.0
    %1456 = vmatprep.mubr.f32.mxu0 0.0
    %1457 = vmatmul.mubr.f32.gmra.mrb[0].mxu0 %v1387
    %v1458 = vpop.f32.mrb[0].mxu0
    %v1459 = vadd.f32 %v485, %v1458
    %v1460 = vpop.f32.mrb[0].mxu0
    %1461 = vmatprep.mubr.f32.mxu0 0.0
    %1462 = vmatmul.mubr.f32.gmra.mrb[0].mxu0 %v1390
    %v1463 = vpop.f32.mrb[0].mxu0
    %v1464 = vadd.f32 %v485, %v1463
    %v1465 = vpop.f32.mrb[0].mxu0
    %1466 = vdwg.mxu0
    %v1467 = vsel %vm568, %v1459, -inf
    %1468 = vmax.xlane.f32.xlu0 %v1467
    %v1469 = vpop.xlane.xlu0 %1468
    %v1470 = vsel %vm568, %v1464, -inf
    %1471 = vmax.xlane.f32.xlu0 %v1470
    %v1472 = vpop.xlane.xlu0 %1471
    %v1473 = vsub.f32 %v1459, %v1469
    %v1474 = vsub.f32 %v1464, %v1472
    %v1475 = vmul.f32 %v1473, 1.442695
    %v1476 = vpow.pop %v1475
    %v1477 = vmul.f32 %v1474, 1.442695
    %v1478 = vpow.pop %v1477
    %v1479 = vsel %vm568, %v1476, 0.0
    %1480 = vadd.xlane.f32.xlu0 %v1479
    %v1481 = vpop.xlane.xlu0 %1480
    %v1482 = vsel %vm568, %v1478, 0.0
    %1483 = vadd.xlane.f32.xlu0 %v1482
    %v1484 = vpop.xlane.xlu0 %1483
    %v1485 = vrcp.pop %v1481
    %v1486 = vmul.f32 %v1476, %v1485
    %v1487 = vrcp.pop %v1484
    %v1488 = vmul.f32 %v1478, %v1487
    %s1489 = scalar_lea.vmem %s8, 16
    %1490 = vst.msk [vmem:[%s1489] sm:$0xff] %vm568, %v1486
    %1491 = vst.msk [vmem:[%s1489 + $0x8] sm:$0xff] %vm568, %v1488
    %v1492 = vsel %vm568, %v1486, 0.0
    %v1493 = vsel %vm568, %v1488, 0.0
    %v1494 = vadd.f32 %v1492, %v1493
    %v1495 = vrot.slane %v1494, 4
    %v1496 = vadd.f32 %v1494, %v1495
    %v1497 = vrot.slane %v1496, 2
    %v1498 = vadd.f32 %v1496, %v1497
    %v1499 = vrot.slane %v1498, 1
    %v1500 = vadd.f32 %v1498, %v1499
    %v1501 = vsel %vm602, %v996, 0.0
    %v1502 = vsel %vm602, %v999, 0.0
    %v1503 = vadd.f32 %v1501, %v1502
    %1504 = vadd.xlane.f32.xlu0 %v1503
    %v1505 = vpop.xlane.xlu0 %1504
    %v1506 = vrot.slane %v1505, 4
    %v1507 = vadd.f32 %v1505, %v1506
    %v1508 = vrot.slane %v1507, 2
    %v1509 = vadd.f32 %v1507, %v1508
    %v1510 = vrot.slane %v1509, 1
    %v1511 = vadd.f32 %v1509, %v1510
    %s1512 = vtos %v1511
    %1513 = vmatprep.subr.mxu0 0.0
    %1514 = vmatpush1.msra.mxu0 %v1486
    %1515 = vmatprep.subr.mxu0 0.0
    %1516 = vmatpush1.msra.mxu0 %v1488
    %1517 = vmatprep.subr.mxu0 0.0
    %1518 = vmatpush1.msra.mxu0 0.0
    %1519 = vmatprep.subr.mxu0 0.0
    %1520 = vmatpush1.msra.mxu0 0.0
    %1521 = vmatprep.subr.mxu0 0.0
    %1522 = vmatpush1.msra.mxu0 0.0
    %1523 = vmatprep.subr.mxu0 0.0
    %1524 = vmatpush1.msra.mxu0 0.0
    %1525 = vmatprep.subr.mxu0 0.0
    %1526 = vmatpush1.msra.mxu0 0.0
    %1527 = vmatprep.subr.mxu0 0.0
    %1528 = vmatpush1.msra.mxu0 0.0
    %1529 = vmatprep.subr.mxu0 0.0
    %1530 = vmatpush1.msra.mxu0 0.0
    %1531 = vmatprep.subr.mxu0 0.0
    %1532 = vmatpush1.msra.mxu0 0.0
    %1533 = vmatprep.subr.mxu0 0.0
    %1534 = vmatpush1.msra.mxu0 0.0
    %1535 = vmatprep.subr.mxu0 0.0
    %1536 = vmatpush1.msra.mxu0 0.0
    %1537 = vmatprep.subr.mxu0 0.0
    %1538 = vmatpush1.msra.mxu0 0.0
    %1539 = vmatprep.subr.mxu0 0.0
    %1540 = vmatpush1.msra.mxu0 0.0
    %1541 = vmatprep.subr.mxu0 0.0
    %1542 = vmatpush1.msra.mxu0 0.0
    %1543 = vmatprep.subr.mxu0 0.0
    %1544 = vmatpush1.msra.mxu0 0.0
    %1545 = vmatprep.subr.mxu0 0.0
    %1546 = vmatpush1.msra.mxu0 0.0
    %1547 = vmatprep.subr.mxu0 0.0
    %1548 = vmatpush1.msra.mxu0 0.0
    %1549 = vmatprep.subr.mxu0 0.0
    %1550 = vmatpush1.msra.mxu0 0.0
    %1551 = vmatprep.subr.mxu0 0.0
    %1552 = vmatpush1.msra.mxu0 0.0
    %1553 = vmatprep.subr.mxu0 0.0
    %1554 = vmatpush1.msra.mxu0 0.0
    %1555 = vmatprep.subr.mxu0 0.0
    %1556 = vmatpush1.msra.mxu0 0.0
    %1557 = vmatprep.subr.mxu0 0.0
    %1558 = vmatpush1.msra.mxu0 0.0
    %1559 = vmatprep.subr.mxu0 0.0
    %1560 = vmatpush1.msra.mxu0 0.0
    %1561 = vmatprep.subr.mxu0 0.0
    %1562 = vmatpush1.msra.mxu0 0.0
    %1563 = vmatprep.subr.mxu0 0.0
    %1564 = vmatpush1.msra.mxu0 0.0
    %1565 = vmatprep.subr.mxu0 0.0
    %1566 = vmatpush1.msra.mxu0 0.0
    %1567 = vmatprep.subr.mxu0 0.0
    %1568 = vmatpush1.msra.mxu0 0.0
    %1569 = vmatprep.subr.mxu0 0.0
    %1570 = vmatpush1.msra.mxu0 0.0
    %1571 = vmatprep.subr.mxu0 0.0
    %1572 = vmatpush1.msra.mxu0 0.0
    %1573 = vmatprep.subr.mxu0 0.0
    %1574 = vmatpush1.msra.mxu0 0.0
    %1575 = vmatprep.subr.mxu0 0.0
    %1576 = vmatpush1.msra.mxu0 0.0
    %1577 = vmatprep.mubr.f32.mxu0 0.0
    %1578 = vmatmul.mubr.f32.gmra.mrb[0].mxu0 %v1009
    %v1579 = vpop.f32.mrb[0].mxu0
    %v1580 = vadd.f32 0.0, %v1579
    %v1581 = vpop.f32.mrb[0].mxu0
    %1582 = vmatprep.mubr.f32.mxu0 0.0
    %1583 = vmatmul.mubr.f32.gmra.mrb[0].mxu0 %v1012
    %v1584 = vpop.f32.mrb[0].mxu0
    %v1585 = vadd.f32 0.0, %v1584
    %v1586 = vpop.f32.mrb[0].mxu0
    %1587 = vdwg.mxu0
    %1588 = vxpose.xlu0.b32.start [1/16] %v1486, 128
    %1589 = vxpose.xlu0.b32.cont [2/16] %v1488, 128
    %1590 = vxpose.xlu0.b32.cont [3/16] 0.0, 128
    %1591 = vxpose.xlu0.b32.cont [4/16] 0.0, 128
    %1592 = vxpose.xlu0.b32.cont [5/16] 0.0, 128
    %1593 = vxpose.xlu0.b32.cont [6/16] 0.0, 128
    %1594 = vxpose.xlu0.b32.cont [7/16] 0.0, 128
    %1595 = vxpose.xlu0.b32.cont [8/16] 0.0, 128
    %1596 = vxpose.xlu0.b32.cont [9/16] 0.0, 128
    %1597 = vxpose.xlu0.b32.cont [10/16] 0.0, 128
    %1598 = vxpose.xlu0.b32.cont [11/16] 0.0, 128
    %1599 = vxpose.xlu0.b32.cont [12/16] 0.0, 128
    %1600 = vxpose.xlu0.b32.cont [13/16] 0.0, 128
    %1601 = vxpose.xlu0.b32.cont [14/16] 0.0, 128
    %1602 = vxpose.xlu0.b32.cont [15/16] 0.0, 128
    %1603 = vxpose.xlu0.b32.end [16/16] 0.0, 128
    %v1604 = vpop.trf.xlu0
    %v1605 = vpop.trf.xlu0
    %v1606 = vpop.trf.xlu0
    %v1607 = vpop.trf.xlu0
    %v1608 = vpop.trf.xlu0
    %v1609 = vpop.trf.xlu0
    %v1610 = vpop.trf.xlu0
    %v1611 = vpop.trf.xlu0
    %v1612 = vpop.trf.xlu0
    %v1613 = vpop.trf.xlu0
    %v1614 = vpop.trf.xlu0
    %v1615 = vpop.trf.xlu0
    %v1616 = vpop.trf.xlu0
    %v1617 = vpop.trf.xlu0
    %v1618 = vpop.trf.xlu0
    %v1619 = vpop.trf.xlu0
    %v1621 = vsel %vm74, %v1604, 0
    %1623 = vmatprep.subr.mxu0 0.0
    %1624 = vmatpush1.msra.mxu0 %v1580
    %1625 = vmatprep.subr.mxu0 0.0
    %1626 = vmatpush1.msra.mxu0 %v1585
    %1627 = vmatprep.subr.mxu0 0.0
    %1628 = vmatpush1.msra.mxu0 0.0
    %1629 = vmatprep.subr.mxu0 0.0
    %1630 = vmatpush1.msra.mxu0 0.0
    %1631 = vmatprep.subr.mxu0 0.0
    %1632 = vmatpush1.msra.mxu0 0.0
    %1633 = vmatprep.subr.mxu0 0.0
    %1634 = vmatpush1.msra.mxu0 0.0
    %1635 = vmatprep.subr.mxu0 0.0
    %1636 = vmatpush1.msra.mxu0 0.0
    %1637 = vmatprep.subr.mxu0 0.0
    %1638 = vmatpush1.msra.mxu0 0.0
    %1639 = vmatprep.subr.mxu0 0.0
    %1640 = vmatpush1.msra.mxu0 0.0
    %1641 = vmatprep.subr.mxu0 0.0
    %1642 = vmatpush1.msra.mxu0 0.0
    %1643 = vmatprep.subr.mxu0 0.0
    %1644 = vmatpush1.msra.mxu0 0.0
    %1645 = vmatprep.subr.mxu0 0.0
    %1646 = vmatpush1.msra.mxu0 0.0
    %1647 = vmatprep.subr.mxu0 0.0
    %1648 = vmatpush1.msra.mxu0 0.0
    %1649 = vmatprep.subr.mxu0 0.0
    %1650 = vmatpush1.msra.mxu0 0.0
    %1651 = vmatprep.subr.mxu0 0.0
    %1652 = vmatpush1.msra.mxu0 0.0
    %1653 = vmatprep.subr.mxu0 0.0
    %1654 = vmatpush1.msra.mxu0 0.0
    %1655 = vmatprep.subr.mxu0 0.0
    %1656 = vmatpush1.msra.mxu0 0.0
    %1657 = vmatprep.subr.mxu0 0.0
    %1658 = vmatpush1.msra.mxu0 0.0
    %1659 = vmatprep.subr.mxu0 0.0
    %1660 = vmatpush1.msra.mxu0 0.0
    %1661 = vmatprep.subr.mxu0 0.0
    %1662 = vmatpush1.msra.mxu0 0.0
    %1663 = vmatprep.subr.mxu0 0.0
    %1664 = vmatpush1.msra.mxu0 0.0
    %1665 = vmatprep.subr.mxu0 0.0
    %1666 = vmatpush1.msra.mxu0 0.0
    %1667 = vmatprep.subr.mxu0 0.0
    %1668 = vmatpush1.msra.mxu0 0.0
    %1669 = vmatprep.subr.mxu0 0.0
    %1670 = vmatpush1.msra.mxu0 0.0
    %1671 = vmatprep.subr.mxu0 0.0
    %1672 = vmatpush1.msra.mxu0 0.0
    %1673 = vmatprep.subr.mxu0 0.0
    %1674 = vmatpush1.msra.mxu0 0.0
    %1675 = vmatprep.subr.mxu0 0.0
    %1676 = vmatpush1.msra.mxu0 0.0
    %1677 = vmatprep.subr.mxu0 0.0
    %1678 = vmatpush1.msra.mxu0 0.0
    %1679 = vmatprep.subr.mxu0 0.0
    %1680 = vmatpush1.msra.mxu0 0.0
    %1681 = vmatprep.subr.mxu0 0.0
    %1682 = vmatpush1.msra.mxu0 0.0
    %1683 = vmatprep.subr.mxu0 0.0
    %1684 = vmatpush1.msra.mxu0 0.0
    %1685 = vmatprep.subr.mxu0 0.0
    %1686 = vmatpush1.msra.mxu0 0.0
    %1687 = vmatprep.mubr.f32.mxu0 0.0
    %1688 = vmatmul.mubr.f32.gmra.mrb[0].mxu0 %v1621
    %v1689 = vpop.f32.mrb[0].mxu0
    %v1690 = vadd.f32 0.0, %v1689
    %v1691 = vpop.f32.mrb[0].mxu0
    %1692 = vdwg.mxu0
    %1693 = vmatprep.subr.mxu0 0.0
    %1694 = vmatpush1.msra.mxu0 %v996
    %1695 = vmatprep.subr.mxu0 0.0
    %1696 = vmatpush1.msra.mxu0 %v999
    %1697 = vmatprep.subr.mxu0 0.0
    %1698 = vmatpush1.msra.mxu0 0.0
    %1699 = vmatprep.subr.mxu0 0.0
    %1700 = vmatpush1.msra.mxu0 0.0
    %1701 = vmatprep.subr.mxu0 0.0
    %1702 = vmatpush1.msra.mxu0 0.0
    %1703 = vmatprep.subr.mxu0 0.0
    %1704 = vmatpush1.msra.mxu0 0.0
    %1705 = vmatprep.subr.mxu0 0.0
    %1706 = vmatpush1.msra.mxu0 0.0
    %1707 = vmatprep.subr.mxu0 0.0
    %1708 = vmatpush1.msra.mxu0 0.0
    %1709 = vmatprep.subr.mxu0 0.0
    %1710 = vmatpush1.msra.mxu0 0.0
    %1711 = vmatprep.subr.mxu0 0.0
    %1712 = vmatpush1.msra.mxu0 0.0
    %1713 = vmatprep.subr.mxu0 0.0
    %1714 = vmatpush1.msra.mxu0 0.0
    %1715 = vmatprep.subr.mxu0 0.0
    %1716 = vmatpush1.msra.mxu0 0.0
    %1717 = vmatprep.subr.mxu0 0.0
    %1718 = vmatpush1.msra.mxu0 0.0
    %1719 = vmatprep.subr.mxu0 0.0
    %1720 = vmatpush1.msra.mxu0 0.0
    %1721 = vmatprep.subr.mxu0 0.0
    %1722 = vmatpush1.msra.mxu0 0.0
    %1723 = vmatprep.subr.mxu0 0.0
    %1724 = vmatpush1.msra.mxu0 0.0
    %1725 = vmatprep.subr.mxu0 0.0
    %1726 = vmatpush1.msra.mxu0 0.0
    %1727 = vmatprep.subr.mxu0 0.0
    %1728 = vmatpush1.msra.mxu0 0.0
    %1729 = vmatprep.subr.mxu0 0.0
    %1730 = vmatpush1.msra.mxu0 0.0
    %1731 = vmatprep.subr.mxu0 0.0
    %1732 = vmatpush1.msra.mxu0 0.0
    %1733 = vmatprep.subr.mxu0 0.0
    %1734 = vmatpush1.msra.mxu0 0.0
    %1735 = vmatprep.subr.mxu0 0.0
    %1736 = vmatpush1.msra.mxu0 0.0
    %1737 = vmatprep.subr.mxu0 0.0
    %1738 = vmatpush1.msra.mxu0 0.0
    %1739 = vmatprep.subr.mxu0 0.0
    %1740 = vmatpush1.msra.mxu0 0.0
    %1741 = vmatprep.subr.mxu0 0.0
    %1742 = vmatpush1.msra.mxu0 0.0
    %1743 = vmatprep.subr.mxu0 0.0
    %1744 = vmatpush1.msra.mxu0 0.0
    %1745 = vmatprep.subr.mxu0 0.0
    %1746 = vmatpush1.msra.mxu0 0.0
    %1747 = vmatprep.subr.mxu0 0.0
    %1748 = vmatpush1.msra.mxu0 0.0
    %1749 = vmatprep.subr.mxu0 0.0
    %1750 = vmatpush1.msra.mxu0 0.0
    %1751 = vmatprep.subr.mxu0 0.0
    %1752 = vmatpush1.msra.mxu0 0.0
    %1753 = vmatprep.subr.mxu0 0.0
    %1754 = vmatpush1.msra.mxu0 0.0
    %1755 = vmatprep.subr.mxu0 0.0
    %1756 = vmatpush1.msra.mxu0 0.0
    %1757 = vmatprep.mubr.f32.mxu0 0.0
    %1758 = vmatmul.mubr.f32.gmra.mrb[0].mxu0 %v1621
    %v1759 = vpop.f32.mrb[0].mxu0
    %v1760 = vadd.f32 0.0, %v1759
    %v1761 = vpop.f32.mrb[0].mxu0
    %1762 = vdwg.mxu0
    %1763 = vxpose.xlu0.b32.start [1/16] %v996, 128
    %1764 = vxpose.xlu0.b32.cont [2/16] %v999, 128
    %1765 = vxpose.xlu0.b32.cont [3/16] 0.0, 128
    %1766 = vxpose.xlu0.b32.cont [4/16] 0.0, 128
    %1767 = vxpose.xlu0.b32.cont [5/16] 0.0, 128
    %1768 = vxpose.xlu0.b32.cont [6/16] 0.0, 128
    %1769 = vxpose.xlu0.b32.cont [7/16] 0.0, 128
    %1770 = vxpose.xlu0.b32.cont [8/16] 0.0, 128
    %1771 = vxpose.xlu0.b32.cont [9/16] 0.0, 128
    %1772 = vxpose.xlu0.b32.cont [10/16] 0.0, 128
    %1773 = vxpose.xlu0.b32.cont [11/16] 0.0, 128
    %1774 = vxpose.xlu0.b32.cont [12/16] 0.0, 128
    %1775 = vxpose.xlu0.b32.cont [13/16] 0.0, 128
    %1776 = vxpose.xlu0.b32.cont [14/16] 0.0, 128
    %1777 = vxpose.xlu0.b32.cont [15/16] 0.0, 128
    %1778 = vxpose.xlu0.b32.end [16/16] 0.0, 128
    %v1779 = vpop.trf.xlu0
    %v1780 = vpop.trf.xlu0
    %v1781 = vpop.trf.xlu0
    %v1782 = vpop.trf.xlu0
    %v1783 = vpop.trf.xlu0
    %v1784 = vpop.trf.xlu0
    %v1785 = vpop.trf.xlu0
    %v1786 = vpop.trf.xlu0
    %v1787 = vpop.trf.xlu0
    %v1788 = vpop.trf.xlu0
    %v1789 = vpop.trf.xlu0
    %v1790 = vpop.trf.xlu0
    %v1791 = vpop.trf.xlu0
    %v1792 = vpop.trf.xlu0
    %v1793 = vpop.trf.xlu0
    %v1794 = vpop.trf.xlu0
    %v1796 = vsel %vm74, %v1779, 0
    %1798 = vmatprep.subr.mxu0 0.0
    %1799 = vmatpush1.msra.mxu0 %v1486
    %1800 = vmatprep.subr.mxu0 0.0
    %1801 = vmatpush1.msra.mxu0 %v1488
    %1802 = vmatprep.subr.mxu0 0.0
    %1803 = vmatpush1.msra.mxu0 0.0
    %1804 = vmatprep.subr.mxu0 0.0
    %1805 = vmatpush1.msra.mxu0 0.0
    %1806 = vmatprep.subr.mxu0 0.0
    %1807 = vmatpush1.msra.mxu0 0.0
    %1808 = vmatprep.subr.mxu0 0.0
    %1809 = vmatpush1.msra.mxu0 0.0
    %1810 = vmatprep.subr.mxu0 0.0
    %1811 = vmatpush1.msra.mxu0 0.0
    %1812 = vmatprep.subr.mxu0 0.0
    %1813 = vmatpush1.msra.mxu0 0.0
    %1814 = vmatprep.subr.mxu0 0.0
    %1815 = vmatpush1.msra.mxu0 0.0
    %1816 = vmatprep.subr.mxu0 0.0
    %1817 = vmatpush1.msra.mxu0 0.0
    %1818 = vmatprep.subr.mxu0 0.0
    %1819 = vmatpush1.msra.mxu0 0.0
    %1820 = vmatprep.subr.mxu0 0.0
    %1821 = vmatpush1.msra.mxu0 0.0
    %1822 = vmatprep.subr.mxu0 0.0
    %1823 = vmatpush1.msra.mxu0 0.0
    %1824 = vmatprep.subr.mxu0 0.0
    %1825 = vmatpush1.msra.mxu0 0.0
    %1826 = vmatprep.subr.mxu0 0.0
    %1827 = vmatpush1.msra.mxu0 0.0
    %1828 = vmatprep.subr.mxu0 0.0
    %1829 = vmatpush1.msra.mxu0 0.0
    %1830 = vmatprep.subr.mxu0 0.0
    %1831 = vmatpush1.msra.mxu0 0.0
    %1832 = vmatprep.subr.mxu0 0.0
    %1833 = vmatpush1.msra.mxu0 0.0
    %1834 = vmatprep.subr.mxu0 0.0
    %1835 = vmatpush1.msra.mxu0 0.0
    %1836 = vmatprep.subr.mxu0 0.0
    %1837 = vmatpush1.msra.mxu0 0.0
    %1838 = vmatprep.subr.mxu0 0.0
    %1839 = vmatpush1.msra.mxu0 0.0
    %1840 = vmatprep.subr.mxu0 0.0
    %1841 = vmatpush1.msra.mxu0 0.0
    %1842 = vmatprep.subr.mxu0 0.0
    %1843 = vmatpush1.msra.mxu0 0.0
    %1844 = vmatprep.subr.mxu0 0.0
    %1845 = vmatpush1.msra.mxu0 0.0
    %1846 = vmatprep.subr.mxu0 0.0
    %1847 = vmatpush1.msra.mxu0 0.0
    %1848 = vmatprep.subr.mxu0 0.0
    %1849 = vmatpush1.msra.mxu0 0.0
    %1850 = vmatprep.subr.mxu0 0.0
    %1851 = vmatpush1.msra.mxu0 0.0
    %1852 = vmatprep.subr.mxu0 0.0
    %1853 = vmatpush1.msra.mxu0 0.0
    %1854 = vmatprep.subr.mxu0 0.0
    %1855 = vmatpush1.msra.mxu0 0.0
    %1856 = vmatprep.subr.mxu0 0.0
    %1857 = vmatpush1.msra.mxu0 0.0
    %1858 = vmatprep.subr.mxu0 0.0
    %1859 = vmatpush1.msra.mxu0 0.0
    %1860 = vmatprep.subr.mxu0 0.0
    %1861 = vmatpush1.msra.mxu0 0.0
    %1862 = vmatprep.mubr.f32.mxu0 0.0
    %1863 = vmatmul.mubr.f32.gmra.mrb[0].mxu0 %v1796
    %v1864 = vpop.f32.mrb[0].mxu0
    %v1865 = vadd.f32 0.0, %v1864
    %v1866 = vpop.f32.mrb[0].mxu0
    %1867 = vdwg.mxu0
    %1869 = vset.pattern.permute.xlu0 0
    %1870 = vperm.xlu0 %1869, %v1760
    %v1871 = vpop.permute.xlu0 %1870
    %v1873 = vlaneseq
    %v1874 = vshrl.u32 %v1873, 7
    %v1875 = vsub.s32 0, %v1874
    %v1876 = vrot.slane %v1865, %v1875
    %v1877 = vmul.f32 %v1871, %v1876
    %s1878 = scalar_lea.vmem %s9, 8
    %1879 = vst [vmem:[%s1878] sm:$0xff] 0.0
    %1880 = vst.msk [vmem:[%s1878] sm:$0x3] %vm981, %v1690
    %1881 = vst.msk [vmem:[%s1878 + $0x2] sm:$0x3] %vm981, %v1877
    %1882 = vst.msk [vmem:[%s1878 + $0x4] sm:$0x1] %vm984, %v1500
    %v1883 = vstv %s1512
    %1884 = vst.msk [vmem:[%s1878 + $0x5] sm:$0x1] %vm984, %v1883
    // Predicated region
    $region42: #{_lambda_.1} parent=1 // pred_check
      _
    $region43: #{_lambda_.1} parent=1 // pred_check_branch
      %1886 = sbr.rel (0) target = $region45
    $region44: #{_lambda_.1} parent=1 // pred_region
      _
    $region45: #{_lambda_.1} parent=1 // pred_fallthru
      _
    // Predicated region
    $region46: #{_lambda_.1} parent=1 // pred_check
      _
    $region47: #{_lambda_.1} parent=1 // pred_check_branch
      %1888 = sbr.rel (0) target = $region49
    $region48: #{_lambda_.1} parent=1 // pred_region
      _
    $region49: #{_lambda_.1} parent=1 // pred_fallthru
      _
    // Predicated region
    $region50: #{_lambda_.1} parent=1 // pred_check
      _
    $region51: #{_lambda_.1} parent=1 // pred_check_branch
      %1890 = sbr.rel (0) target = $region53
    $region52: #{_lambda_.1} parent=1 // pred_region
      _
    $region53: #{_lambda_.1} parent=1 // pred_fallthru
      _
    // Predicated region
    $region54: #{_lambda_.1} parent=1 // pred_check
      _
    $region55: #{_lambda_.1} parent=1 // pred_check_branch
      %1892 = sbr.rel (0) target = $region57
    $region56: #{_lambda_.1} parent=1 // pred_region
      _
    $region57: #{_lambda_.1} parent=1 // pred_fallthru
      _
    %1893 = vsyncpa [#allocation3], 1
    %1894 = vsyncpa [#allocation5], 1

</llo_original>
